<compile_context>
chip_gen: v5e
topology: v5e:2x2
jax: 0.10.0
libtpu: 0.0.40
codegen_flags: <defaults>
</compile_context>

<pallas_src>
import math
import functools

import jax
import jax.numpy as jnp
import numpy as np
from jax.experimental import pallas as pl
from jax.experimental.pallas import tpu as pltpu

LANE = 128
TILE_SUBLANE = 16  # bf16-safe sublane granularity for the batch tile


def _round_up(x, m):
    return ((x + m - 1) // m) * m


# -----------------------------------------------------------------------------
# Kernel
# -----------------------------------------------------------------------------
def actor_kernel(x_ref, w1_ref, b1_ref, w2_ref, b2_ref, wh_ref, bh_ref,
                 noise_ref, out_ref,
                 *, action_dim, a_pad, log_std_min, log_std_max, pack_logpi):
    # ---- MLP hot path: bf16 MXU matmuls, f32 accumulation ----
    x = x_ref[...]  # already bf16 (cast on host before upload)
    h1 = jnp.dot(x, w1_ref[...], preferred_element_type=jnp.float32) + b1_ref[...]
    h1 = jnp.maximum(h1, 0.0).astype(jnp.bfloat16)
    h2 = jnp.dot(h1, w2_ref[...], preferred_element_type=jnp.float32) + b2_ref[...]
    h2 = jnp.maximum(h2, 0.0).astype(jnp.bfloat16)

    # Single merged head matmul (N = 2*A_pad = 256 -> one pass on the 256-wide
    # MXU); slice at the 128-aligned boundary (no relayout).
    head = jnp.dot(h2, wh_ref[...], preferred_element_type=jnp.float32) + bh_ref[...]
    mu = head[:, :a_pad]
    log_std_raw = head[:, a_pad:]

    # ---- log_std squashing / rescaling (f32, VPU/EUP) ----
    log_std = jnp.tanh(log_std_raw)
    log_std = log_std_min + 0.5 * (log_std_max - log_std_min) * (log_std + 1.0)

    # ---- reparameterized sample ----
    noise = noise_ref[...]
    std = jnp.exp(log_std)
    pi = mu + noise * std

    # ---- squash ----
    mu_sq = jnp.tanh(mu)
    pi_sq = jnp.tanh(pi)

    # ---- gaussian_logprob + squash log-det correction in ONE lane reduce ----
    # (padded action lanes masked out so they don't pollute the sum)
    gauss = -0.5 * noise * noise - log_std
    corr = jnp.log(jnp.maximum(1.0 - pi_sq * pi_sq, 0.0) + 1e-06)
    lane_ids = jax.lax.broadcasted_iota(jnp.int32, gauss.shape, 1)
    valid = lane_ids < action_dim
    per_lane = jnp.where(valid, gauss - corr, 0.0)
    log_pi = (jnp.sum(per_lane, axis=-1, keepdims=True)
              - 0.5 * math.log(2.0 * math.pi) * action_dim)

    # ---- fused, lane-dense output slab: one store / one DMA stream per step ----
    if pack_logpi:
        # stash the per-row log_pi scalar in the first *padded* lane of the
        # log_std segment (lane index == action_dim < a_pad)
        log_std_seg = jnp.where(lane_ids == action_dim,
                                jnp.broadcast_to(log_pi, log_std.shape), log_std)
        out_ref[...] = jnp.concatenate([mu_sq, pi_sq, log_std_seg], axis=-1)
    else:
        logpi_seg = jnp.broadcast_to(log_pi, (mu_sq.shape[0], LANE))
        out_ref[...] = jnp.concatenate([mu_sq, pi_sq, log_std, logpi_seg], axis=-1)


# -----------------------------------------------------------------------------
# Host-side parameter packing: pad to 128-lane shapes, merge head, cast bf16
# -----------------------------------------------------------------------------
def pack_params(w1, b1, w2, b2, w3, b3):
    """Inputs in (in, out) layout: w1 (F,H), w2 (H,H), w3 (H,2A); biases (H,)/(2A,)."""
    w1 = jnp.asarray(w1); w2 = jnp.asarray(w2); w3 = jnp.asarray(w3)
    F, H = w1.shape
    A = w3.shape[1] // 2
    F_pad = _round_up(F, LANE)
    H_pad = _round_up(H, LANE)       # 128 alignment only (review: no 256 padding)
    A_pad = _round_up(A, LANE)

    def pad2(w, rows, cols):
        return jnp.pad(w, ((0, rows - w.shape[0]), (0, cols - w.shape[1])))

    b1 = jnp.asarray(b1).reshape(1, -1)
    b2 = jnp.asarray(b2).reshape(1, -1)
    b3 = jnp.asarray(b3).reshape(-1)

    # Merged head: columns [0:A_pad) = mu block, [A_pad:2*A_pad) = log_std block.
    w_head = jnp.zeros((H_pad, 2 * A_pad), jnp.float32)
    w_head = w_head.at[:H, :A].set(w3[:, :A])
    w_head = w_head.at[:H, A_pad:A_pad + A].set(w3[:, A:])
    b_head = jnp.zeros((1, 2 * A_pad), jnp.float32)
    b_head = b_head.at[0, :A].set(b3[:A])
    b_head = b_head.at[0, A_pad:A_pad + A].set(b3[A:])

    return dict(
        w1=pad2(w1, F_pad, H_pad).astype(jnp.bfloat16),
        b1=pad2(b1, 1, H_pad).astype(jnp.float32),
        w2=pad2(w2, H_pad, H_pad).astype(jnp.bfloat16),
        b2=pad2(b2, 1, H_pad).astype(jnp.float32),
        w_head=w_head.astype(jnp.bfloat16),
        b_head=b_head.astype(jnp.float32),
        feat=F, hidden=H, action=A,
    )


# -----------------------------------------------------------------------------
# Wrapper
# -----------------------------------------------------------------------------
def actor_forward(obs, packed, noise, *, log_std_min, log_std_max, tile_b=512):
    """obs: (B, F) encoded features. Returns (mu, pi, log_pi, log_std, obs)."""
    B, F = obs.shape
    A = packed["action"]
    F_pad, H_pad = packed["w1"].shape
    A_pad = packed["w_head"].shape[1] // 2

    # Batch tile: multiple of 16 sublanes; cap so the grid has >= 2 steps when
    # the batch allows (lets v7x's 2 TensorCores both get work).
    half_b = _round_up(max(1, -(-B // 2)), TILE_SUBLANE)
    tile_b = max(TILE_SUBLANE, min(_round_up(tile_b, TILE_SUBLANE), half_b))
    B_pad = _round_up(B, tile_b)

    # bf16 obs upload (halves input DMA); noise stays f32.
    obs_p = jnp.pad(obs.astype(jnp.bfloat16), ((0, B_pad - B), (0, F_pad - F)))
    noise_p = jnp.pad(noise.astype(jnp.float32), ((0, B_pad - B), (0, A_pad - A)))

    pack_logpi = A < A_pad
    out_cols = 3 * A_pad + (0 if pack_logpi else LANE)

    kern = functools.partial(
        actor_kernel,
        action_dim=A,
        a_pad=A_pad,
        log_std_min=float(log_std_min),
        log_std_max=float(log_std_max),
        pack_logpi=pack_logpi,
    )

    # VMEM budget from the actual footprint (weights + double-buffered I/O tiles
    # + activation scratch) with headroom; clamp to sane bounds for v7x (64 MiB).
    bytes_weights = ((packed["w1"].size + packed["w2"].size + packed["w_head"].size) * 2
                     + (packed["b1"].size + packed["b2"].size + packed["b_head"].size) * 4)
    bytes_io_step = tile_b * (F_pad * 2 + A_pad * 4 + out_cols * 4)
    bytes_act = tile_b * (2 * H_pad + 8 * A_pad) * 4
    vmem_limit = int(2 * bytes_weights + 2 * bytes_io_step + bytes_act + (8 << 20))
    vmem_limit = max(32 << 20, min(vmem_limit, 64 << 20))

    def build_call(single_buffer_weights):
        def resident(shape):
            # Grid-invariant weights/biases: same block every step -> fetched once.
            if single_buffer_weights:
                return pl.BlockSpec(shape, lambda i: (0, 0),
                                    pipeline_mode=pl.Buffered(1))
            return pl.BlockSpec(shape, lambda i: (0, 0))

        def batched(cols):
            return pl.BlockSpec((tile_b, cols), lambda i: (i, 0))

        return pl.pallas_call(
            kern,
            out_shape=jax.ShapeDtypeStruct((B_pad, out_cols), jnp.float32),
            grid=(B_pad // tile_b,),
            in_specs=[
                batched(F_pad),                     # obs tile (bf16)
                resident((F_pad, H_pad)),           # w1
                resident((1, H_pad)),               # b1
                resident((H_pad, H_pad)),           # w2
                resident((1, H_pad)),               # b2
                resident((H_pad, 2 * A_pad)),       # merged head weight
                resident((1, 2 * A_pad)),           # merged head bias
                batched(A_pad),                     # noise tile
            ],
            out_specs=batched(out_cols),
            compiler_params=pltpu.CompilerParams(
                dimension_semantics=("parallel",),   # megacore: split batch tiles
                vmem_limit_bytes=vmem_limit,
            ),
        )

    args = (obs_p, packed["w1"], packed["b1"], packed["w2"], packed["b2"],
            packed["w_head"], packed["b_head"], noise_p)
    try:
        out = jax.block_until_ready(build_call(True)(*args))
    except Exception:
        # TODO(synk): pl.Buffered(1) single-buffering of grid-invariant weights is
        # not accepted by every jax/Mosaic version; fall back to default buffering.
        out = jax.block_until_ready(build_call(False)(*args))

    mu = out[:B, :A]
    pi = out[:B, A_pad:A_pad + A]
    log_std = out[:B, 2 * A_pad:2 * A_pad + A]
    if pack_logpi:
        log_pi = out[:B, 2 * A_pad + A:2 * A_pad + A + 1]
    else:
        log_pi = out[:B, 3 * A_pad:3 * A_pad + 1]

    # forward() also returns the encoder output (obs) unchanged.
    return (mu, pi, log_pi, log_std, obs)


# -----------------------------------------------------------------------------
# Pure-JAX reference (same packed bf16 weights) for correctness check
# -----------------------------------------------------------------------------
def actor_reference(obs, packed, noise, *, log_std_min, log_std_max):
    A = packed["action"]
    F = packed["feat"]
    F_pad, _ = packed["w1"].shape
    A_pad = packed["w_head"].shape[1] // 2
    x = jnp.pad(obs.astype(jnp.float32), ((0, 0), (0, F_pad - F))).astype(jnp.bfloat16)
    h1 = jnp.maximum(jnp.dot(x, packed["w1"], preferred_element_type=jnp.float32)
                     + packed["b1"], 0.0).astype(jnp.bfloat16)
    h2 = jnp.maximum(jnp.dot(h1, packed["w2"], preferred_element_type=jnp.float32)
                     + packed["b2"], 0.0).astype(jnp.bfloat16)
    head = (jnp.dot(h2, packed["w_head"], preferred_element_type=jnp.float32)
            + packed["b_head"])
    mu = head[:, :A]
    ls = head[:, A_pad:A_pad + A]
    log_std = jnp.tanh(ls)
    log_std = log_std_min + 0.5 * (log_std_max - log_std_min) * (log_std + 1.0)
    std = jnp.exp(log_std)
    pi = mu + noise * std
    residual = jnp.sum(-0.5 * noise * noise - log_std, axis=-1, keepdims=True)
    log_pi = residual - 0.5 * math.log(2.0 * math.pi) * A
    mu_s = jnp.tanh(mu)
    pi_s = jnp.tanh(pi)
    log_pi = log_pi - jnp.sum(
        jnp.log(jnp.maximum(1.0 - pi_s * pi_s, 0.0) + 1e-06), axis=-1, keepdims=True)
    return mu_s, pi_s, log_pi, log_std


# -----------------------------------------------------------------------------
# Deterministic parameter init (mimics weight_init: orthogonal W, zero bias)
# -----------------------------------------------------------------------------
def orthogonal(key, out_dim, in_dim):
    a = jax.random.normal(key, (max(out_dim, in_dim), min(out_dim, in_dim)),
                          dtype=jnp.float32)
    q, _ = jnp.linalg.qr(a)
    q = q[:out_dim, :in_dim] if out_dim >= in_dim else q.T[:out_dim, :in_dim]
    return q.astype(jnp.float32)


def init_params(key, feat_dim, hidden_dim, action_dim):
    k1, k2, k3 = jax.random.split(key, 3)
    # Stored pre-transposed as (in, out) so the kernel computes x @ W.
    w1 = orthogonal(k1, hidden_dim, feat_dim).T          # (F, H)
    b1 = jnp.zeros((hidden_dim,), jnp.float32)
    w2 = orthogonal(k2, hidden_dim, hidden_dim).T        # (H, H)
    b2 = jnp.zeros((hidden_dim,), jnp.float32)
    w3 = orthogonal(k3, 2 * action_dim, hidden_dim).T    # (H, 2A)
    b3 = jnp.zeros((2 * action_dim,), jnp.float32)
    return (w1, b1, w2, b2, w3, b3)


if __name__ == "__main__":
    key = jax.random.PRNGKey(0)
    k_obs, k_noise, k_params = jax.random.split(key, 3)

    B, FEAT, HIDDEN, ACTION = 8, 32, 32, 4
    LOG_STD_MIN, LOG_STD_MAX = -10.0, 2.0

    obs = jax.random.normal(k_obs, (B, FEAT), dtype=jnp.float32)
    noise = jax.random.normal(k_noise, (B, ACTION), dtype=jnp.float32)
    packed = pack_params(*init_params(k_params, FEAT, HIDDEN, ACTION))

    mu, pi, log_pi, log_std, obs_out = actor_forward(
        obs, packed, noise, log_std_min=LOG_STD_MIN, log_std_max=LOG_STD_MAX)
    jax.block_until_ready((mu, pi, log_pi, log_std, obs_out))

    assert mu.shape == (B, ACTION)
    assert pi.shape == (B, ACTION)
    assert log_pi.shape == (B, 1)
    assert log_std.shape == (B, ACTION)
    assert obs_out.shape == (B, FEAT)

    mu_r, pi_r, log_pi_r, log_std_r = actor_reference(
        obs, packed, noise, log_std_min=LOG_STD_MIN, log_std_max=LOG_STD_MAX)
    np.testing.assert_allclose(np.asarray(mu), np.asarray(mu_r), rtol=5e-2, atol=5e-2)
    np.testing.assert_allclose(np.asarray(pi), np.asarray(pi_r), rtol=5e-2, atol=5e-2)
    np.testing.assert_allclose(np.asarray(log_std), np.asarray(log_std_r),
                               rtol=5e-2, atol=5e-2)
    np.testing.assert_allclose(np.asarray(log_pi), np.asarray(log_pi_r),
                               rtol=5e-2, atol=2e-1)

    print("KERNEL_OK")
</pallas_src>

<mosaic_0001>
module attributes {stable_mosaic.version = 11 : i64} {
  func.func @actor_kernel(%arg0: i32, %arg1: memref<16x128xbf16, #tpu.memory_space<vmem>>, %arg2: memref<128x128xbf16, #tpu.memory_space<vmem>>, %arg3: memref<1x128xf32, #tpu.memory_space<vmem>>, %arg4: memref<128x128xbf16, #tpu.memory_space<vmem>>, %arg5: memref<1x128xf32, #tpu.memory_space<vmem>>, %arg6: memref<128x256xbf16, #tpu.memory_space<vmem>>, %arg7: memref<1x256xf32, #tpu.memory_space<vmem>>, %arg8: memref<16x128xf32, #tpu.memory_space<vmem>>, %arg9: memref<16x384xf32, #tpu.memory_space<vmem>>) attributes {dimension_semantics = [#tpu.dimension_semantics<parallel>], iteration_bounds = array<i64: 1>, scalar_prefetch = 0 : i64, scratch_operands = 0 : i64, tpu.core_type = #tpu.core_type<tc>, window_params = [{transform_indices = @transform_0, window_bounds = array<i64: 16, 128>}, {pipeline_mode = #tpu.pipeline_mode<synchronous>, transform_indices = @transform_1, window_bounds = array<i64: 128, 128>}, {pipeline_mode = #tpu.pipeline_mode<synchronous>, transform_indices = @transform_2, window_bounds = array<i64: 1, 128>}, {pipeline_mode = #tpu.pipeline_mode<synchronous>, transform_indices = @transform_3, window_bounds = array<i64: 128, 128>}, {pipeline_mode = #tpu.pipeline_mode<synchronous>, transform_indices = @transform_4, window_bounds = array<i64: 1, 128>}, {pipeline_mode = #tpu.pipeline_mode<synchronous>, transform_indices = @transform_5, window_bounds = array<i64: 128, 256>}, {pipeline_mode = #tpu.pipeline_mode<synchronous>, transform_indices = @transform_6, window_bounds = array<i64: 1, 256>}, {transform_indices = @transform_7, window_bounds = array<i64: 16, 128>}, {transform_indices = @transform_8, window_bounds = array<i64: 16, 384>}]} {
    %c0 = arith.constant 0 : index
    %c0_0 = arith.constant 0 : index
    %0 = vector.load %arg1[%c0, %c0_0] : memref<16x128xbf16, #tpu.memory_space<vmem>>, vector<16x128xbf16>
    %c0_1 = arith.constant 0 : index
    %c0_2 = arith.constant 0 : index
    %1 = vector.load %arg2[%c0_1, %c0_2] : memref<128x128xbf16, #tpu.memory_space<vmem>>, vector<128x128xbf16>
    %cst = arith.constant dense<0.000000e+00> : vector<16x128xf32>
    %2 = tpu.matmul %0, %1, %cst {dimension_numbers = #tpu.dot_dimension_numbers<[1], [0], [0], [1], [0, 0, 1, 1], [], []>} : vector<16x128xbf16>, vector<128x128xbf16>, vector<16x128xf32> -> vector<16x128xf32>
    %c0_3 = arith.constant 0 : index
    %c0_4 = arith.constant 0 : index
    %3 = vector.load %arg3[%c0_3, %c0_4] : memref<1x128xf32, #tpu.memory_space<vmem>>, vector<1x128xf32>
    %4 = vector.broadcast %3 : vector<1x128xf32> to vector<16x128xf32>
    %5 = arith.addf %2, %4 : vector<16x128xf32>
    %cst_5 = arith.constant 0.000000e+00 : f32
    %6 = vector.broadcast %cst_5 : f32 to vector<16x128xf32>
    %7 = arith.maximumf %5, %6 : vector<16x128xf32>
    %8 = arith.truncf %7 : vector<16x128xf32> to vector<16x128xbf16>
    %c0_6 = arith.constant 0 : index
    %c0_7 = arith.constant 0 : index
    %9 = vector.load %arg4[%c0_6, %c0_7] : memref<128x128xbf16, #tpu.memory_space<vmem>>, vector<128x128xbf16>
    %cst_8 = arith.constant dense<0.000000e+00> : vector<16x128xf32>
    %10 = tpu.matmul %8, %9, %cst_8 {dimension_numbers = #tpu.dot_dimension_numbers<[1], [0], [0], [1], [0, 0, 1, 1], [], []>} : vector<16x128xbf16>, vector<128x128xbf16>, vector<16x128xf32> -> vector<16x128xf32>
    %c0_9 = arith.constant 0 : index
    %c0_10 = arith.constant 0 : index
    %11 = vector.load %arg5[%c0_9, %c0_10] : memref<1x128xf32, #tpu.memory_space<vmem>>, vector<1x128xf32>
    %12 = vector.broadcast %11 : vector<1x128xf32> to vector<16x128xf32>
    %13 = arith.addf %10, %12 : vector<16x128xf32>
    %cst_11 = arith.constant 0.000000e+00 : f32
    %14 = vector.broadcast %cst_11 : f32 to vector<16x128xf32>
    %15 = arith.maximumf %13, %14 : vector<16x128xf32>
    %16 = arith.truncf %15 : vector<16x128xf32> to vector<16x128xbf16>
    %c0_12 = arith.constant 0 : index
    %c0_13 = arith.constant 0 : index
    %17 = vector.load %arg6[%c0_12, %c0_13] : memref<128x256xbf16, #tpu.memory_space<vmem>>, vector<128x256xbf16>
    %cst_14 = arith.constant dense<0.000000e+00> : vector<16x256xf32>
    %18 = tpu.matmul %16, %17, %cst_14 {dimension_numbers = #tpu.dot_dimension_numbers<[1], [0], [0], [1], [0, 0, 1, 1], [], []>} : vector<16x128xbf16>, vector<128x256xbf16>, vector<16x256xf32> -> vector<16x256xf32>
    %c0_15 = arith.constant 0 : index
    %c0_16 = arith.constant 0 : index
    %19 = vector.load %arg7[%c0_15, %c0_16] : memref<1x256xf32, #tpu.memory_space<vmem>>, vector<1x256xf32>
    %20 = vector.broadcast %19 : vector<1x256xf32> to vector<16x256xf32>
    %21 = arith.addf %18, %20 : vector<16x256xf32>
    %22 = vector.extract_strided_slice %21 {offsets = [0, 0], sizes = [16, 128], strides = [1, 1]} : vector<16x256xf32> to vector<16x128xf32>
    %23 = vector.extract_strided_slice %21 {offsets = [0, 128], sizes = [16, 128], strides = [1, 1]} : vector<16x256xf32> to vector<16x128xf32>
    %24 = math.tanh %23 : vector<16x128xf32>
    %cst_17 = arith.constant 1.000000e+00 : f32
    %25 = vector.broadcast %cst_17 : f32 to vector<16x128xf32>
    %26 = arith.addf %24, %25 : vector<16x128xf32>
    %cst_18 = arith.constant 6.000000e+00 : f32
    %27 = vector.broadcast %cst_18 : f32 to vector<16x128xf32>
    %28 = arith.mulf %27, %26 : vector<16x128xf32>
    %cst_19 = arith.constant -1.000000e+01 : f32
    %29 = vector.broadcast %cst_19 : f32 to vector<16x128xf32>
    %30 = arith.addf %29, %28 : vector<16x128xf32>
    %c0_20 = arith.constant 0 : index
    %c0_21 = arith.constant 0 : index
    %31 = vector.load %arg8[%c0_20, %c0_21] : memref<16x128xf32, #tpu.memory_space<vmem>>, vector<16x128xf32>
    %32 = math.exp %30 : vector<16x128xf32>
    %33 = arith.mulf %31, %32 : vector<16x128xf32>
    %34 = arith.addf %22, %33 : vector<16x128xf32>
    %35 = math.tanh %22 : vector<16x128xf32>
    %36 = math.tanh %34 : vector<16x128xf32>
    %cst_22 = arith.constant -5.000000e-01 : f32
    %37 = vector.broadcast %cst_22 : f32 to vector<16x128xf32>
    %38 = arith.mulf %37, %31 : vector<16x128xf32>
    %39 = arith.mulf %38, %31 : vector<16x128xf32>
    %40 = arith.subf %39, %30 : vector<16x128xf32>
    %41 = arith.mulf %36, %36 : vector<16x128xf32>
    %cst_23 = arith.constant 1.000000e+00 : f32
    %42 = vector.broadcast %cst_23 : f32 to vector<16x128xf32>
    %43 = arith.subf %42, %41 : vector<16x128xf32>
    %cst_24 = arith.constant 0.000000e+00 : f32
    %44 = vector.broadcast %cst_24 : f32 to vector<16x128xf32>
    %45 = arith.maximumf %43, %44 : vector<16x128xf32>
    %cst_25 = arith.constant 9.99999997E-7 : f32
    %46 = vector.broadcast %cst_25 : f32 to vector<16x128xf32>
    %47 = arith.addf %45, %46 : vector<16x128xf32>
    %48 = math.log %47 : vector<16x128xf32>
    %49 = tpu.iota {dimensions = array<i32: 1>} : vector<16x128xi32>
    %c4_i32 = arith.constant 4 : i32
    %50 = vector.broadcast %c4_i32 : i32 to vector<16x128xi32>
    %51 = arith.cmpi slt, %49, %50 : vector<16x128xi32>
    %52 = arith.subf %40, %48 : vector<16x128xf32>
    %cst_26 = arith.constant 0.000000e+00 : f32
    %53 = vector.broadcast %cst_26 : f32 to vector<16x128xf32>
    %54 = arith.select %51, %52, %53 : vector<16x128xi1>, vector<16x128xf32>
    %cst_27 = arith.constant dense<0.000000e+00> : vector<16xf32>
    %55 = vector.multi_reduction <add>, %54, %cst_27 [1] : vector<16x128xf32> to vector<16xf32>
    %56 = vector.shape_cast %55 : vector<16xf32> to vector<16x1xf32>
    %cst_28 = arith.constant 3.67575407 : f32
    %57 = vector.broadcast %cst_28 : f32 to vector<16x1xf32>
    %58 = arith.subf %56, %57 : vector<16x1xf32>
    %c4_i32_29 = arith.constant 4 : i32
    %59 = vector.broadcast %c4_i32_29 : i32 to vector<16x128xi32>
    %60 = arith.cmpi eq, %49, %59 : vector<16x128xi32>
    %61 = vector.shape_cast %58 : vector<16x1xf32> to vector<16x1xf32>
    %62 = vector.broadcast %61 : vector<16x1xf32> to vector<16x128xf32>
    %63 = arith.select %60, %62, %30 : vector<16x128xi1>, vector<16x128xf32>
    %64 = tpu.concatenate %35, %36, %63 in 1 : vector<16x128xf32>, vector<16x128xf32>, vector<16x128xf32> -> vector<16x384xf32>
    %c0_30 = arith.constant 0 : index
    %c0_31 = arith.constant 0 : index
    %65 = vector.load %arg9[%c0_30, %c0_31] : memref<16x384xf32, #tpu.memory_space<vmem>>, vector<16x384xf32>
    tpu.vector_store %arg9[%c0_30, %c0_31], %64 {strides = array<i32>} : memref<16x384xf32, #tpu.memory_space<vmem>>, vector<16x384xf32>,
    return
  }
  func.func @transform_0(%arg0: i32) -> (i32, i32) {
    %c0_i32 = arith.constant 0 : i32
    %c0_i32_0 = arith.constant 0 : i32
    return %arg0, %c0_i32 : i32, i32
  }
  func.func @transform_1(%arg0: i32) -> (i32, i32) {
    %c0_i32 = arith.constant 0 : i32
    %c0_i32_0 = arith.constant 0 : i32
    %c0_i32_1 = arith.constant 0 : i32
    return %c0_i32, %c0_i32_0 : i32, i32
  }
  func.func @transform_2(%arg0: i32) -> (i32, i32) {
    %c0_i32 = arith.constant 0 : i32
    %c0_i32_0 = arith.constant 0 : i32
    %c0_i32_1 = arith.constant 0 : i32
    return %c0_i32, %c0_i32_0 : i32, i32
  }
  func.func @transform_3(%arg0: i32) -> (i32, i32) {
    %c0_i32 = arith.constant 0 : i32
    %c0_i32_0 = arith.constant 0 : i32
    %c0_i32_1 = arith.constant 0 : i32
    return %c0_i32, %c0_i32_0 : i32, i32
  }
  func.func @transform_4(%arg0: i32) -> (i32, i32) {
    %c0_i32 = arith.constant 0 : i32
    %c0_i32_0 = arith.constant 0 : i32
    %c0_i32_1 = arith.constant 0 : i32
    return %c0_i32, %c0_i32_0 : i32, i32
  }
  func.func @transform_5(%arg0: i32) -> (i32, i32) {
    %c0_i32 = arith.constant 0 : i32
    %c0_i32_0 = arith.constant 0 : i32
    %c0_i32_1 = arith.constant 0 : i32
    return %c0_i32, %c0_i32_0 : i32, i32
  }
  func.func @transform_6(%arg0: i32) -> (i32, i32) {
    %c0_i32 = arith.constant 0 : i32
    %c0_i32_0 = arith.constant 0 : i32
    %c0_i32_1 = arith.constant 0 : i32
    return %c0_i32, %c0_i32_0 : i32, i32
  }
  func.func @transform_7(%arg0: i32) -> (i32, i32) {
    %c0_i32 = arith.constant 0 : i32
    %c0_i32_0 = arith.constant 0 : i32
    return %arg0, %c0_i32 : i32, i32
  }
  func.func @transform_8(%arg0: i32) -> (i32, i32) {
    %c0_i32 = arith.constant 0 : i32
    %c0_i32_0 = arith.constant 0 : i32
    return %arg0, %c0_i32 : i32, i32
  }
}

module attributes {stable_mosaic.version = 11 : i64} {
  func.func @actor_kernel(%arg0: i32, %arg1: memref<16x128xbf16, #tpu.memory_space<vmem>>, %arg2: memref<128x128xbf16, #tpu.memory_space<vmem>>, %arg3: memref<1x128xf32, #tpu.memory_space<vmem>>, %arg4: memref<128x128xbf16, #tpu.memory_space<vmem>>, %arg5: memref<1x128xf32, #tpu.memory_space<vmem>>, %arg6: memref<128x256xbf16, #tpu.memory_space<vmem>>, %arg7: memref<1x256xf32, #tpu.memory_space<vmem>>, %arg8: memref<16x128xf32, #tpu.memory_space<vmem>>, %arg9: memref<16x384xf32, #tpu.memory_space<vmem>>) attributes {dimension_semantics = [#tpu.dimension_semantics<parallel>], iteration_bounds = array<i64: 1>, scalar_prefetch = 0 : i64, scratch_operands = 0 : i64, tpu.core_type = #tpu.core_type<tc>, window_params = [{transform_indices = @transform_0, window_bounds = array<i64: 16, 128>}, {pipeline_mode = #tpu.pipeline_mode<synchronous>, transform_indices = @transform_1, window_bounds = array<i64: 128, 128>}, {pipeline_mode = #tpu.pipeline_mode<synchronous>, transform_indices = @transform_2, window_bounds = array<i64: 1, 128>}, {pipeline_mode = #tpu.pipeline_mode<synchronous>, transform_indices = @transform_3, window_bounds = array<i64: 128, 128>}, {pipeline_mode = #tpu.pipeline_mode<synchronous>, transform_indices = @transform_4, window_bounds = array<i64: 1, 128>}, {pipeline_mode = #tpu.pipeline_mode<synchronous>, transform_indices = @transform_5, window_bounds = array<i64: 128, 256>}, {pipeline_mode = #tpu.pipeline_mode<synchronous>, transform_indices = @transform_6, window_bounds = array<i64: 1, 256>}, {transform_indices = @transform_7, window_bounds = array<i64: 16, 128>}, {transform_indices = @transform_8, window_bounds = array<i64: 16, 384>}]} {
    %c0 = arith.constant 0 : index
    %c0_0 = arith.constant 0 : index
    %0 = vector.load %arg1[%c0, %c0_0] : memref<16x128xbf16, #tpu.memory_space<vmem>>, vector<16x128xbf16>
    %c0_1 = arith.constant 0 : index
    %c0_2 = arith.constant 0 : index
    %1 = vector.load %arg2[%c0_1, %c0_2] : memref<128x128xbf16, #tpu.memory_space<vmem>>, vector<128x128xbf16>
    %cst = arith.constant dense<0.000000e+00> : vector<16x128xf32>
    %2 = tpu.matmul %0, %1, %cst {dimension_numbers = #tpu.dot_dimension_numbers<[1], [0], [0], [1], [0, 0, 1, 1], [], []>} : vector<16x128xbf16>, vector<128x128xbf16>, vector<16x128xf32> -> vector<16x128xf32>
    %c0_3 = arith.constant 0 : index
    %c0_4 = arith.constant 0 : index
    %3 = vector.load %arg3[%c0_3, %c0_4] : memref<1x128xf32, #tpu.memory_space<vmem>>, vector<1x128xf32>
    %4 = vector.broadcast %3 : vector<1x128xf32> to vector<16x128xf32>
    %5 = arith.addf %2, %4 : vector<16x128xf32>
    %cst_5 = arith.constant 0.000000e+00 : f32
    %6 = vector.broadcast %cst_5 : f32 to vector<16x128xf32>
    %7 = arith.maximumf %5, %6 : vector<16x128xf32>
    %8 = arith.truncf %7 : vector<16x128xf32> to vector<16x128xbf16>
    %c0_6 = arith.constant 0 : index
    %c0_7 = arith.constant 0 : index
    %9 = vector.load %arg4[%c0_6, %c0_7] : memref<128x128xbf16, #tpu.memory_space<vmem>>, vector<128x128xbf16>
    %cst_8 = arith.constant dense<0.000000e+00> : vector<16x128xf32>
    %10 = tpu.matmul %8, %9, %cst_8 {dimension_numbers = #tpu.dot_dimension_numbers<[1], [0], [0], [1], [0, 0, 1, 1], [], []>} : vector<16x128xbf16>, vector<128x128xbf16>, vector<16x128xf32> -> vector<16x128xf32>
    %c0_9 = arith.constant 0 : index
    %c0_10 = arith.constant 0 : index
    %11 = vector.load %arg5[%c0_9, %c0_10] : memref<1x128xf32, #tpu.memory_space<vmem>>, vector<1x128xf32>
    %12 = vector.broadcast %11 : vector<1x128xf32> to vector<16x128xf32>
    %13 = arith.addf %10, %12 : vector<16x128xf32>
    %cst_11 = arith.constant 0.000000e+00 : f32
    %14 = vector.broadcast %cst_11 : f32 to vector<16x128xf32>
    %15 = arith.maximumf %13, %14 : vector<16x128xf32>
    %16 = arith.truncf %15 : vector<16x128xf32> to vector<16x128xbf16>
    %c0_12 = arith.constant 0 : index
    %c0_13 = arith.constant 0 : index
    %17 = vector.load %arg6[%c0_12, %c0_13] : memref<128x256xbf16, #tpu.memory_space<vmem>>, vector<128x256xbf16>
    %cst_14 = arith.constant dense<0.000000e+00> : vector<16x256xf32>
    %18 = tpu.matmul %16, %17, %cst_14 {dimension_numbers = #tpu.dot_dimension_numbers<[1], [0], [0], [1], [0, 0, 1, 1], [], []>} : vector<16x128xbf16>, vector<128x256xbf16>, vector<16x256xf32> -> vector<16x256xf32>
    %c0_15 = arith.constant 0 : index
    %c0_16 = arith.constant 0 : index
    %19 = vector.load %arg7[%c0_15, %c0_16] : memref<1x256xf32, #tpu.memory_space<vmem>>, vector<1x256xf32>
    %20 = vector.broadcast %19 : vector<1x256xf32> to vector<16x256xf32>
    %21 = arith.addf %18, %20 : vector<16x256xf32>
    %22 = vector.extract_strided_slice %21 {offsets = [0, 0], sizes = [16, 128], strides = [1, 1]} : vector<16x256xf32> to vector<16x128xf32>
    %23 = vector.extract_strided_slice %21 {offsets = [0, 128], sizes = [16, 128], strides = [1, 1]} : vector<16x256xf32> to vector<16x128xf32>
    %24 = math.tanh %23 : vector<16x128xf32>
    %cst_17 = arith.constant 1.000000e+00 : f32
    %25 = vector.broadcast %cst_17 : f32 to vector<16x128xf32>
    %26 = arith.addf %24, %25 : vector<16x128xf32>
    %cst_18 = arith.constant 6.000000e+00 : f32
    %27 = vector.broadcast %cst_18 : f32 to vector<16x128xf32>
    %28 = arith.mulf %27, %26 : vector<16x128xf32>
    %cst_19 = arith.constant -1.000000e+01 : f32
    %29 = vector.broadcast %cst_19 : f32 to vector<16x128xf32>
    %30 = arith.addf %29, %28 : vector<16x128xf32>
    %c0_20 = arith.constant 0 : index
    %c0_21 = arith.constant 0 : index
    %31 = vector.load %arg8[%c0_20, %c0_21] : memref<16x128xf32, #tpu.memory_space<vmem>>, vector<16x128xf32>
    %32 = math.exp %30 : vector<16x128xf32>
    %33 = arith.mulf %31, %32 : vector<16x128xf32>
    %34 = arith.addf %22, %33 : vector<16x128xf32>
    %35 = math.tanh %22 : vector<16x128xf32>
    %36 = math.tanh %34 : vector<16x128xf32>
    %cst_22 = arith.constant -5.000000e-01 : f32
    %37 = vector.broadcast %cst_22 : f32 to vector<16x128xf32>
    %38 = arith.mulf %37, %31 : vector<16x128xf32>
    %39 = arith.mulf %38, %31 : vector<16x128xf32>
    %40 = arith.subf %39, %30 : vector<16x128xf32>
    %41 = arith.mulf %36, %36 : vector<16x128xf32>
    %cst_23 = arith.constant 1.000000e+00 : f32
    %42 = vector.broadcast %cst_23 : f32 to vector<16x128xf32>
    %43 = arith.subf %42, %41 : vector<16x128xf32>
    %cst_24 = arith.constant 0.000000e+00 : f32
    %44 = vector.broadcast %cst_24 : f32 to vector<16x128xf32>
    %45 = arith.maximumf %43, %44 : vector<16x128xf32>
    %cst_25 = arith.constant 9.99999997E-7 : f32
    %46 = vector.broadcast %cst_25 : f32 to vector<16x128xf32>
    %47 = arith.addf %45, %46 : vector<16x128xf32>
    %48 = math.log %47 : vector<16x128xf32>
    %49 = tpu.iota {dimensions = array<i32: 1>} : vector<16x128xi32>
    %c4_i32 = arith.constant 4 : i32
    %50 = vector.broadcast %c4_i32 : i32 to vector<16x128xi32>
    %51 = arith.cmpi slt, %49, %50 : vector<16x128xi32>
    %52 = arith.subf %40, %48 : vector<16x128xf32>
    %cst_26 = arith.constant 0.000000e+00 : f32
    %53 = vector.broadcast %cst_26 : f32 to vector<16x128xf32>
    %54 = arith.select %51, %52, %53 : vector<16x128xi1>, vector<16x128xf32>
    %cst_27 = arith.constant dense<0.000000e+00> : vector<16xf32>
    %55 = vector.multi_reduction <add>, %54, %cst_27 [1] : vector<16x128xf32> to vector<16xf32>
    %56 = vector.shape_cast %55 : vector<16xf32> to vector<16x1xf32>
    %cst_28 = arith.constant 3.67575407 : f32
    %57 = vector.broadcast %cst_28 : f32 to vector<16x1xf32>
    %58 = arith.subf %56, %57 : vector<16x1xf32>
    %c4_i32_29 = arith.constant 4 : i32
    %59 = vector.broadcast %c4_i32_29 : i32 to vector<16x128xi32>
    %60 = arith.cmpi eq, %49, %59 : vector<16x128xi32>
    %61 = vector.shape_cast %58 : vector<16x1xf32> to vector<16x1xf32>
    %62 = vector.broadcast %61 : vector<16x1xf32> to vector<16x128xf32>
    %63 = arith.select %60, %62, %30 : vector<16x128xi1>, vector<16x128xf32>
    %64 = tpu.concatenate %35, %36, %63 in 1 : vector<16x128xf32>, vector<16x128xf32>, vector<16x128xf32> -> vector<16x384xf32>
    %c0_30 = arith.constant 0 : index
    %c0_31 = arith.constant 0 : index
    %65 = vector.load %arg9[%c0_30, %c0_31] : memref<16x384xf32, #tpu.memory_space<vmem>>, vector<16x384xf32>
    tpu.vector_store %arg9[%c0_30, %c0_31], %64 {strides = array<i32>} : memref<16x384xf32, #tpu.memory_space<vmem>>, vector<16x384xf32>,
    return
  }
  func.func @transform_0(%arg0: i32) -> (i32, i32) {
    %c0_i32 = arith.constant 0 : i32
    %c0_i32_0 = arith.constant 0 : i32
    return %arg0, %c0_i32 : i32, i32
  }
  func.func @transform_1(%arg0: i32) -> (i32, i32) {
    %c0_i32 = arith.constant 0 : i32
    %c0_i32_0 = arith.constant 0 : i32
    %c0_i32_1 = arith.constant 0 : i32
    return %c0_i32, %c0_i32_0 : i32, i32
  }
  func.func @transform_2(%arg0: i32) -> (i32, i32) {
    %c0_i32 = arith.constant 0 : i32
    %c0_i32_0 = arith.constant 0 : i32
    %c0_i32_1 = arith.constant 0 : i32
    return %c0_i32, %c0_i32_0 : i32, i32
  }
  func.func @transform_3(%arg0: i32) -> (i32, i32) {
    %c0_i32 = arith.constant 0 : i32
    %c0_i32_0 = arith.constant 0 : i32
    %c0_i32_1 = arith.constant 0 : i32
    return %c0_i32, %c0_i32_0 : i32, i32
  }
  func.func @transform_4(%arg0: i32) -> (i32, i32) {
    %c0_i32 = arith.constant 0 : i32
    %c0_i32_0 = arith.constant 0 : i32
    %c0_i32_1 = arith.constant 0 : i32
    return %c0_i32, %c0_i32_0 : i32, i32
  }
  func.func @transform_5(%arg0: i32) -> (i32, i32) {
    %c0_i32 = arith.constant 0 : i32
    %c0_i32_0 = arith.constant 0 : i32
    %c0_i32_1 = arith.constant 0 : i32
    return %c0_i32, %c0_i32_0 : i32, i32
  }
  func.func @transform_6(%arg0: i32) -> (i32, i32) {
    %c0_i32 = arith.constant 0 : i32
    %c0_i32_0 = arith.constant 0 : i32
    %c0_i32_1 = arith.constant 0 : i32
    return %c0_i32, %c0_i32_0 : i32, i32
  }
  func.func @transform_7(%arg0: i32) -> (i32, i32) {
    %c0_i32 = arith.constant 0 : i32
    %c0_i32_0 = arith.constant 0 : i32
    return %arg0, %c0_i32 : i32, i32
  }
  func.func @transform_8(%arg0: i32) -> (i32, i32) {
    %c0_i32 = arith.constant 0 : i32
    %c0_i32_0 = arith.constant 0 : i32
    return %arg0, %c0_i32 : i32, i32
  }
}

</mosaic_0001>

<llo_original>
// kernel: tpu_custom_call.1
$region0: #{tpu_custom_call.1}
  #allocation0 [shape = 'u32[]', space=smem, size = 0x4, offset = 0x4, fixed_abs, tag = 'smem constant byte address 0x4 - core index']
  #allocation1 [shape = 'u32[72,128]{1,0:T(1,128)}', space=vmem, size = 0x9000, scoped, tag = 'internal scratch']
  %s0 = inlined_call_operand.hbm [shape: bf16[16,128], index: 0, kind: input, shape index: {}]
  %s1 = inlined_call_operand.hbm [shape: bf16[128,128], index: 1, kind: input, shape index: {}]
  %s2 = inlined_call_operand.vmem [shape: f32[1,128], index: 2, kind: input, shape index: {}]
  %s3 = inlined_call_operand.hbm [shape: bf16[128,128], index: 3, kind: input, shape index: {}]
  %s4 = inlined_call_operand.hbm [shape: f32[1,128], index: 4, kind: input, shape index: {}]
  %s5 = inlined_call_operand.hbm [shape: bf16[128,256], index: 5, kind: input, shape index: {}]
  %s6 = inlined_call_operand.vmem [shape: f32[1,256], index: 6, kind: input, shape index: {}]
  %s7 = inlined_call_operand.hbm [shape: f32[16,128], index: 7, kind: input, shape index: {}]
  %s8 = inlined_call_operand.hbm [shape: f32[16,384], index: 8, kind: output, shape index: {}]
  %s9 = sld [smem:[#allocation0]]
  $region66: #{tpu_custom_call.1} parent=0
    _
  %s11 = ssub.s32 1, %s9
  %s12 = scalar_select 0, %s11, %s9
  $region1: #{tpu_custom_call.1} parent=0
    #allocation2 [shape = 'u8[4096]{0}', space=vmem, size = 0x1000, scoped, tag = 'input window, operand 0, single buffered']
    #allocation3 [shape = 's32[1]{0}', space=sflag, size = 0x4, scoped, tag = 'scoped memory for tpu_custom_call.1']
    #allocation4 [shape = 's32[1]{0}', space=sflag, size = 0x4, scoped, tag = 'scoped memory for tpu_custom_call.1']
    #allocation5 [shape = 'u8[32768]{0}', space=vmem, size = 0x8000, scoped, tag = 'input window, operand 1, single buffered']
    #allocation6 [shape = 's32[1]{0}', space=sflag, size = 0x4, scoped, tag = 'scoped memory for tpu_custom_call.1']
    #allocation7 [shape = 'u8[32768]{0}', space=vmem, size = 0x8000, scoped, tag = 'input window, operand 3, single buffered']
    #allocation8 [shape = 'u8[512]{0}', space=vmem, size = 0x400, scoped, tag = 'input window, operand 4, single buffered']
    #allocation9 [shape = 's32[1]{0}', space=sflag, size = 0x4, scoped, tag = 'scoped memory for tpu_custom_call.1']
    #allocation10 [shape = 'u8[65536]{0}', space=vmem, size = 0x10000, scoped, tag = 'input window, operand 5, single buffered']
    #allocation11 [shape = 'u8[8192]{0}', space=vmem, size = 0x2000, scoped, tag = 'input window, operand 7, single buffered']
    #allocation12 [shape = 's32[1]{0}', space=sflag, size = 0x4, scoped, tag = 'scoped memory for tpu_custom_call.1']
    #allocation13 [shape = 'u8[24576]{0}', space=vmem, size = 0x6000, scoped, tag = 'output window, operand 0, single buffered']
    %13 = vsyncpa [#allocation3], 0
    %14 = vsyncpa [#allocation6], 0
    %15 = vsyncpa [#allocation9], 0
    %16 = vsyncpa [#allocation12], 0
    %17 = vsyncpa [#allocation4], 0
    // Predicated region
    $region2: #{tpu_custom_call.1} parent=1 // pred_check
      _
    $region3: #{tpu_custom_call.1} parent=1 // pred_check_branch
      %19 = sbr.rel (0) target = $region5
    $region4: #{tpu_custom_call.1} parent=1 // pred_region
      %21 = vsyncadd [#allocation3], 0
      %s22 = sshll.u32 %s0, 4
      %s23 = int_to_ptr.hbm [resolvable:$true] %s22
      %s24 = sshll.u32 [#allocation2], 4
      %s25 = int_to_ptr.vmem [resolvable:$true] %s24
      %30 = dma.hbm_to_vmem [thread:$0]  %s23, 128, %s25, [#allocation3], 64, 64, 4
    $region5: #{tpu_custom_call.1} parent=1 // pred_fallthru
      _
    // Predicated region
    $region6: #{tpu_custom_call.1} parent=1 // pred_check
      _
    $region7: #{tpu_custom_call.1} parent=1 // pred_check_branch
      %32 = sbr.rel (0) target = $region9
    $region8: #{tpu_custom_call.1} parent=1 // pred_region
      %34 = vsyncadd [#allocation6], 0
      %s35 = sshll.u32 %s1, 4
      %s36 = int_to_ptr.hbm [resolvable:$true] %s35
      %s37 = sshll.u32 [#allocation5], 4
      %s38 = int_to_ptr.vmem [resolvable:$true] %s37
      %43 = dma.hbm_to_vmem [thread:$0]  %s36, 1024, %s38, [#allocation6], 64, 64, 4
    $region9: #{tpu_custom_call.1} parent=1 // pred_fallthru
      _
    // Predicated region
    $region10: #{tpu_custom_call.1} parent=1 // pred_check
      _
    $region11: #{tpu_custom_call.1} parent=1 // pred_check_branch
      %45 = sbr.rel (0) target = $region13
    $region12: #{tpu_custom_call.1} parent=1 // pred_region
      _
    $region13: #{tpu_custom_call.1} parent=1 // pred_fallthru
      _
    // Predicated region
    $region14: #{tpu_custom_call.1} parent=1 // pred_check
      _
    $region15: #{tpu_custom_call.1} parent=1 // pred_check_branch
      %47 = sbr.rel (0) target = $region17
    $region16: #{tpu_custom_call.1} parent=1 // pred_region
      %49 = vsyncadd [#allocation6], 0
      %s50 = sshll.u32 %s3, 4
      %s51 = int_to_ptr.hbm [resolvable:$true] %s50
      %s52 = sshll.u32 [#allocation7], 4
      %s53 = int_to_ptr.vmem [resolvable:$true] %s52
      %58 = dma.hbm_to_vmem [thread:$0]  %s51, 1024, %s53, [#allocation6], 64, 64, 4
    $region17: #{tpu_custom_call.1} parent=1 // pred_fallthru
      _
    // Predicated region
    $region18: #{tpu_custom_call.1} parent=1 // pred_check
      _
    $region19: #{tpu_custom_call.1} parent=1 // pred_check_branch
      %60 = sbr.rel (0) target = $region21
    $region20: #{tpu_custom_call.1} parent=1 // pred_region
      %62 = vsyncadd [#allocation9], 0
      %s64 = sshll.u32 %s4, 4
      %s65 = int_to_ptr.hbm [resolvable:$true] %s64
      %s66 = sshll.u32 [#allocation8], 4
      %s67 = int_to_ptr.vmem [resolvable:$true] %s66
      %69 = dma.hbm_to_vmem [thread:$0]  %s65, 16, %s67, [#allocation9]
    $region21: #{tpu_custom_call.1} parent=1 // pred_fallthru
      _
    // Predicated region
    $region22: #{tpu_custom_call.1} parent=1 // pred_check
      _
    $region23: #{tpu_custom_call.1} parent=1 // pred_check_branch
      %71 = sbr.rel (0) target = $region25
    $region24: #{tpu_custom_call.1} parent=1 // pred_region
      %73 = vsyncadd [#allocation9], 0
      %s74 = sshll.u32 %s5, 4
      %s75 = int_to_ptr.hbm [resolvable:$true] %s74
      %s76 = sshll.u32 [#allocation10], 4
      %s77 = int_to_ptr.vmem [resolvable:$true] %s76
      %82 = dma.hbm_to_vmem [thread:$0]  %s75, 2048, %s77, [#allocation9], 128, 128, 8
    $region25: #{tpu_custom_call.1} parent=1 // pred_fallthru
      _
    // Predicated region
    $region26: #{tpu_custom_call.1} parent=1 // pred_check
      _
    $region27: #{tpu_custom_call.1} parent=1 // pred_check_branch
      %84 = sbr.rel (0) target = $region29
    $region28: #{tpu_custom_call.1} parent=1 // pred_region
      _
    $region29: #{tpu_custom_call.1} parent=1 // pred_fallthru
      _
    // Predicated region
    $region30: #{tpu_custom_call.1} parent=1 // pred_check
      _
    $region31: #{tpu_custom_call.1} parent=1 // pred_check_branch
      %86 = sbr.rel (0) target = $region33
    $region32: #{tpu_custom_call.1} parent=1 // pred_region
      %88 = vsyncadd [#allocation12], 0
      %s89 = sshll.u32 %s7, 4
      %s90 = int_to_ptr.hbm [resolvable:$true] %s89
      %s91 = sshll.u32 [#allocation11], 4
      %s92 = int_to_ptr.vmem [resolvable:$true] %s91
      %97 = dma.hbm_to_vmem [thread:$0]  %s90, 256, %s92, [#allocation12], 128, 128, 8
    $region33: #{tpu_custom_call.1} parent=1 // pred_fallthru
      _
    // Predicated region
    $region34: #{tpu_custom_call.1} parent=1 // pred_check
      _
    $region35: #{tpu_custom_call.1} parent=1 // pred_check_branch
      %99 = sbr.rel (0) target = $region37
    $region36: #{tpu_custom_call.1} parent=1 // pred_region
      %101 = dma.done [#allocation3], 128
    $region37: #{tpu_custom_call.1} parent=1 // pred_fallthru
      _
    // Predicated region
    $region38: #{tpu_custom_call.1} parent=1 // pred_check
      _
    $region39: #{tpu_custom_call.1} parent=1 // pred_check_branch
      %103 = sbr.rel (0) target = $region41
    $region40: #{tpu_custom_call.1} parent=1 // pred_region
      %105 = dma.done [#allocation6], 1024
    $region41: #{tpu_custom_call.1} parent=1 // pred_fallthru
      _
    // Predicated region
    $region42: #{tpu_custom_call.1} parent=1 // pred_check
      _
    $region43: #{tpu_custom_call.1} parent=1 // pred_check_branch
      %107 = sbr.rel (0) target = $region45
    $region44: #{tpu_custom_call.1} parent=1 // pred_region
      %109 = dma.done [#allocation6], 1024
    $region45: #{tpu_custom_call.1} parent=1 // pred_fallthru
      _
    // Predicated region
    $region46: #{tpu_custom_call.1} parent=1 // pred_check
      _
    $region47: #{tpu_custom_call.1} parent=1 // pred_check_branch
      %111 = sbr.rel (0) target = $region49
    $region48: #{tpu_custom_call.1} parent=1 // pred_region
      %113 = dma.done [#allocation9], 16
    $region49: #{tpu_custom_call.1} parent=1 // pred_fallthru
      _
    // Predicated region
    $region50: #{tpu_custom_call.1} parent=1 // pred_check
      _
    $region51: #{tpu_custom_call.1} parent=1 // pred_check_branch
      %115 = sbr.rel (0) target = $region53
    $region52: #{tpu_custom_call.1} parent=1 // pred_region
      %117 = dma.done [#allocation9], 2048
    $region53: #{tpu_custom_call.1} parent=1 // pred_fallthru
      _
    // Predicated region
    $region54: #{tpu_custom_call.1} parent=1 // pred_check
      _
    $region55: #{tpu_custom_call.1} parent=1 // pred_check_branch
      %119 = sbr.rel (0) target = $region57
    $region56: #{tpu_custom_call.1} parent=1 // pred_region
      %121 = dma.done [#allocation12], 256
    $region57: #{tpu_custom_call.1} parent=1 // pred_fallthru
      _
    %v122 = vld [vmem:[#allocation2] sm:$0xf]
    %v123 = vld [vmem:[#allocation2 + $0x4] sm:$0xf]
    %v124 = vld [vmem:[#allocation5] sm:$0xf]
    %v125 = vld [vmem:[#allocation5 + $0x4] sm:$0xf]
    %v126 = vld [vmem:[#allocation5 + $0x8] sm:$0xf]
    %v127 = vld [vmem:[#allocation5 + $0xc] sm:$0xf]
    %v128 = vld [vmem:[#allocation5 + $0x10] sm:$0xf]
    %v129 = vld [vmem:[#allocation5 + $0x14] sm:$0xf]
    %v130 = vld [vmem:[#allocation5 + $0x18] sm:$0xf]
    %v131 = vld [vmem:[#allocation5 + $0x1c] sm:$0xf]
    %v132 = vld [vmem:[#allocation5 + $0x20] sm:$0xf]
    %v133 = vld [vmem:[#allocation5 + $0x24] sm:$0xf]
    %v134 = vld [vmem:[#allocation5 + $0x28] sm:$0xf]
    %v135 = vld [vmem:[#allocation5 + $0x2c] sm:$0xf]
    %v136 = vld [vmem:[#allocation5 + $0x30] sm:$0xf]
    %v137 = vld [vmem:[#allocation5 + $0x34] sm:$0xf]
    %v138 = vld [vmem:[#allocation5 + $0x38] sm:$0xf]
    %v139 = vld [vmem:[#allocation5 + $0x3c] sm:$0xf]
    %v140 = vld [vmem:[%s2] sm:$0x1]
    %v142 = vperm.slane %v140, 0
    %v146 = vunpack.c.l.b16 %v122
    %v147 = vunpack.c.l.b16 %v123
    %v148 = vpack.c.b16 %v147, %v146
    %v166 = vunpack.c.l.b16 %v124
    %v167 = vunpack.c.l.b16 %v125
    %v168 = vunpack.c.l.b16 %v126
    %v169 = vunpack.c.l.b16 %v127
    %v170 = vunpack.c.l.b16 %v128
    %v171 = vunpack.c.l.b16 %v129
    %v172 = vunpack.c.l.b16 %v130
    %v173 = vunpack.c.l.b16 %v131
    %v174 = vunpack.c.l.b16 %v132
    %v175 = vunpack.c.l.b16 %v133
    %v176 = vunpack.c.l.b16 %v134
    %v177 = vunpack.c.l.b16 %v135
    %v178 = vunpack.c.l.b16 %v136
    %v179 = vunpack.c.l.b16 %v137
    %v180 = vunpack.c.l.b16 %v138
    %v181 = vunpack.c.l.b16 %v139
    %v182 = vpack.c.b16 %v167, %v166
    %v183 = vpack.c.b16 %v169, %v168
    %v184 = vpack.c.b16 %v171, %v170
    %v185 = vpack.c.b16 %v173, %v172
    %v186 = vpack.c.b16 %v175, %v174
    %v187 = vpack.c.b16 %v177, %v176
    %v188 = vpack.c.b16 %v179, %v178
    %v189 = vpack.c.b16 %v181, %v180
    %198 = vmatpush.bf16.msra.mxu0 %v189
    %199 = vmatpush.bf16.msra.mxu0 %v188
    %200 = vmatpush.bf16.msra.mxu0 %v187
    %201 = vmatpush.bf16.msra.mxu0 %v186
    %202 = vmatpush.bf16.msra.mxu0 %v185
    %203 = vmatpush.bf16.msra.mxu0 %v184
    %204 = vmatpush.bf16.msra.mxu0 %v183
    %205 = vmatpush.bf16.msra.mxu0 %v182
    %206 = vmatmul.bf16.gmra.mxu0 %v148
    %v207 = vpop.f32.mrf.mxu0
    %v208 = vadd.f32 %v142, %v207
    %v209 = vpop.f32.mrf.mxu0
    %v210 = vadd.f32 %v142, %v209
    %211 = vdwg.mxu0
    %v212 = vmax.f32 %v208, 0.0
    %v213 = vmax.f32 %v210, 0.0
    %v214 = vpack.c.bf16 %v213, %v212
    %v215 = vld [vmem:[#allocation7] sm:$0xf]
    %v216 = vld [vmem:[#allocation7 + $0x4] sm:$0xf]
    %v217 = vld [vmem:[#allocation7 + $0x8] sm:$0xf]
    %v218 = vld [vmem:[#allocation7 + $0xc] sm:$0xf]
    %v219 = vld [vmem:[#allocation7 + $0x10] sm:$0xf]
    %v220 = vld [vmem:[#allocation7 + $0x14] sm:$0xf]
    %v221 = vld [vmem:[#allocation7 + $0x18] sm:$0xf]
    %v222 = vld [vmem:[#allocation7 + $0x1c] sm:$0xf]
    %v223 = vld [vmem:[#allocation7 + $0x20] sm:$0xf]
    %v224 = vld [vmem:[#allocation7 + $0x24] sm:$0xf]
    %v225 = vld [vmem:[#allocation7 + $0x28] sm:$0xf]
    %v226 = vld [vmem:[#allocation7 + $0x2c] sm:$0xf]
    %v227 = vld [vmem:[#allocation7 + $0x30] sm:$0xf]
    %v228 = vld [vmem:[#allocation7 + $0x34] sm:$0xf]
    %v229 = vld [vmem:[#allocation7 + $0x38] sm:$0xf]
    %v230 = vld [vmem:[#allocation7 + $0x3c] sm:$0xf]
    %v231 = vld [vmem:[#allocation8] sm:$0x1]
    %v233 = vperm.slane %v231, 0
    %v251 = vunpack.c.l.b16 %v215
    %v252 = vunpack.c.l.b16 %v216
    %v253 = vunpack.c.l.b16 %v217
    %v254 = vunpack.c.l.b16 %v218
    %v255 = vunpack.c.l.b16 %v219
    %v256 = vunpack.c.l.b16 %v220
    %v257 = vunpack.c.l.b16 %v221
    %v258 = vunpack.c.l.b16 %v222
    %v259 = vunpack.c.l.b16 %v223
    %v260 = vunpack.c.l.b16 %v224
    %v261 = vunpack.c.l.b16 %v225
    %v262 = vunpack.c.l.b16 %v226
    %v263 = vunpack.c.l.b16 %v227
    %v264 = vunpack.c.l.b16 %v228
    %v265 = vunpack.c.l.b16 %v229
    %v266 = vunpack.c.l.b16 %v230
    %v267 = vpack.c.b16 %v252, %v251
    %v268 = vpack.c.b16 %v254, %v253
    %v269 = vpack.c.b16 %v256, %v255
    %v270 = vpack.c.b16 %v258, %v257
    %v271 = vpack.c.b16 %v260, %v259
    %v272 = vpack.c.b16 %v262, %v261
    %v273 = vpack.c.b16 %v264, %v263
    %v274 = vpack.c.b16 %v266, %v265
    %283 = vmatpush.bf16.msra.mxu0 %v274
    %284 = vmatpush.bf16.msra.mxu0 %v273
    %285 = vmatpush.bf16.msra.mxu0 %v272
    %286 = vmatpush.bf16.msra.mxu0 %v271
    %287 = vmatpush.bf16.msra.mxu0 %v270
    %288 = vmatpush.bf16.msra.mxu0 %v269
    %289 = vmatpush.bf16.msra.mxu0 %v268
    %290 = vmatpush.bf16.msra.mxu0 %v267
    %291 = vmatmul.bf16.gmra.mxu0 %v214
    %v292 = vpop.f32.mrf.mxu0
    %v293 = vadd.f32 %v233, %v292
    %v294 = vpop.f32.mrf.mxu0
    %v295 = vadd.f32 %v233, %v294
    %296 = vdwg.mxu0
    %v297 = vmax.f32 %v293, 0.0
    %v298 = vmax.f32 %v295, 0.0
    %v299 = vpack.c.bf16 %v298, %v297
    %v300 = vld [vmem:[#allocation10] sm:$0xff]
    %v301 = vld [vmem:[#allocation10 + $0x8] sm:$0xff]
    %v302 = vld [vmem:[#allocation10 + $0x10] sm:$0xff]
    %v303 = vld [vmem:[#allocation10 + $0x18] sm:$0xff]
    %v304 = vld [vmem:[#allocation10 + $0x20] sm:$0xff]
    %v305 = vld [vmem:[#allocation10 + $0x28] sm:$0xff]
    %v306 = vld [vmem:[#allocation10 + $0x30] sm:$0xff]
    %v307 = vld [vmem:[#allocation10 + $0x38] sm:$0xff]
    %v308 = vld [vmem:[#allocation10 + $0x40] sm:$0xff]
    %v309 = vld [vmem:[#allocation10 + $0x48] sm:$0xff]
    %v310 = vld [vmem:[#allocation10 + $0x50] sm:$0xff]
    %v311 = vld [vmem:[#allocation10 + $0x58] sm:$0xff]
    %v312 = vld [vmem:[#allocation10 + $0x60] sm:$0xff]
    %v313 = vld [vmem:[#allocation10 + $0x68] sm:$0xff]
    %v314 = vld [vmem:[#allocation10 + $0x70] sm:$0xff]
    %v315 = vld [vmem:[#allocation10 + $0x78] sm:$0xff]
    %v316 = vld [vmem:[%s6] sm:$0x3]
    %v318 = vperm.slane %v316, 0
    %v319 = vperm.slane %v316, 1
    %v338 = vunpack.c.l.b16 %v300
    %v339 = vunpack.c.h.b16 %v300
    %v340 = vunpack.c.l.b16 %v301
    %v341 = vunpack.c.h.b16 %v301
    %v342 = vunpack.c.l.b16 %v302
    %v343 = vunpack.c.h.b16 %v302
    %v344 = vunpack.c.l.b16 %v303
    %v345 = vunpack.c.h.b16 %v303
    %v346 = vunpack.c.l.b16 %v304
    %v347 = vunpack.c.h.b16 %v304
    %v348 = vunpack.c.l.b16 %v305
    %v349 = vunpack.c.h.b16 %v305
    %v350 = vunpack.c.l.b16 %v306
    %v351 = vunpack.c.h.b16 %v306
    %v352 = vunpack.c.l.b16 %v307
    %v353 = vunpack.c.h.b16 %v307
    %v354 = vunpack.c.l.b16 %v308
    %v355 = vunpack.c.h.b16 %v308
    %v356 = vunpack.c.l.b16 %v309
    %v357 = vunpack.c.h.b16 %v309
    %v358 = vunpack.c.l.b16 %v310
    %v359 = vunpack.c.h.b16 %v310
    %v360 = vunpack.c.l.b16 %v311
    %v361 = vunpack.c.h.b16 %v311
    %v362 = vunpack.c.l.b16 %v312
    %v363 = vunpack.c.h.b16 %v312
    %v364 = vunpack.c.l.b16 %v313
    %v365 = vunpack.c.h.b16 %v313
    %v366 = vunpack.c.l.b16 %v314
    %v367 = vunpack.c.h.b16 %v314
    %v368 = vunpack.c.l.b16 %v315
    %v369 = vunpack.c.h.b16 %v315
    %v370 = vpack.c.b16 %v340, %v338
    %v371 = vpack.c.b16 %v341, %v339
    %v372 = vpack.c.b16 %v344, %v342
    %v373 = vpack.c.b16 %v345, %v343
    %v374 = vpack.c.b16 %v348, %v346
    %v375 = vpack.c.b16 %v349, %v347
    %v376 = vpack.c.b16 %v352, %v350
    %v377 = vpack.c.b16 %v353, %v351
    %v378 = vpack.c.b16 %v356, %v354
    %v379 = vpack.c.b16 %v357, %v355
    %v380 = vpack.c.b16 %v360, %v358
    %v381 = vpack.c.b16 %v361, %v359
    %v382 = vpack.c.b16 %v364, %v362
    %v383 = vpack.c.b16 %v365, %v363
    %v384 = vpack.c.b16 %v368, %v366
    %v385 = vpack.c.b16 %v369, %v367
    %402 = vmatpush.bf16.msra.mxu0 %v384
    %403 = vmatpush.bf16.msra.mxu0 %v382
    %404 = vmatpush.bf16.msra.mxu0 %v380
    %405 = vmatpush.bf16.msra.mxu0 %v378
    %406 = vmatpush.bf16.msra.mxu0 %v376
    %407 = vmatpush.bf16.msra.mxu0 %v374
    %408 = vmatpush.bf16.msra.mxu0 %v372
    %409 = vmatpush.bf16.msra.mxu0 %v370
    %410 = vmatmul.bf16.gmra.mxu0 %v299
    %v411 = vpop.f32.mrf.mxu0
    %v412 = vadd.f32 %v318, %v411
    %v413 = vpop.f32.mrf.mxu0
    %v414 = vadd.f32 %v318, %v413
    %415 = vdwg.mxu0
    %416 = vmatpush.bf16.msra.mxu0 %v385
    %417 = vmatpush.bf16.msra.mxu0 %v383
    %418 = vmatpush.bf16.msra.mxu0 %v381
    %419 = vmatpush.bf16.msra.mxu0 %v379
    %420 = vmatpush.bf16.msra.mxu0 %v377
    %421 = vmatpush.bf16.msra.mxu0 %v375
    %422 = vmatpush.bf16.msra.mxu0 %v373
    %423 = vmatpush.bf16.msra.mxu0 %v371
    %424 = vmatmul.bf16.gmra.mxu0 %v299
    %v425 = vpop.f32.mrf.mxu0
    %v426 = vadd.f32 %v319, %v425
    %v427 = vpop.f32.mrf.mxu0
    %v428 = vadd.f32 %v319, %v427
    %429 = vdwg.mxu0
    %v430 = vtanh.pop %v426
    %v431 = vtanh.pop %v428
    %v432 = vadd.f32 %v430, 1.0
    %v433 = vadd.f32 %v431, 1.0
    %v434 = vmul.f32 %v432, 6.0
    %v435 = vmul.f32 %v433, 6.0
    %v436 = vadd.f32 %v434, -10.0
    %v437 = vadd.f32 %v435, -10.0
    %v438 = vld [vmem:[#allocation11] sm:$0xff]
    %v439 = vld [vmem:[#allocation11 + $0x8] sm:$0xff]
    %v440 = vmul.f32 %v436, 1.442695
    %v441 = vpow.pop %v440
    %v442 = vmul.f32 %v437, 1.442695
    %v443 = vpow.pop %v442
    %v444 = vmul.f32 %v438, %v441
    %v445 = vmul.f32 %v439, %v443
    %v446 = vadd.f32 %v412, %v444
    %v447 = vadd.f32 %v414, %v445
    %v448 = vtanh.pop %v412
    %v449 = vtanh.pop %v414
    %v450 = vtanh.pop %v446
    %v451 = vtanh.pop %v447
    %v452 = vmul.f32 %v438, -0.5
    %v453 = vmul.f32 %v439, -0.5
    %v454 = vmul.f32 %v452, %v438
    %v455 = vmul.f32 %v453, %v439
    %v456 = vsub.f32 %v454, %v436
    %v457 = vsub.f32 %v455, %v437
    %v458 = vmul.f32 %v450, %v450
    %v459 = vmul.f32 %v451, %v451
    %v460 = vsub.f32 1.0, %v458
    %v461 = vsub.f32 1.0, %v459
    %v462 = vmax.f32 %v460, 0.0
    %v463 = vmax.f32 %v461, 0.0
    %v464 = vadd.f32 %v462, 1e-06
    %v465 = vadd.f32 %v463, 1e-06
    %v466 = vlog2.pop %v464
    %v467 = vmul.f32 %v466, 0.6931472
    %v468 = vlog2.pop %v465
    %v469 = vmul.f32 %v468, 0.6931472
    %v470 = vlaneseq
    %v471 = vand.u32 %v470, 127
    %vm472 = vcmp.lt.s32.totalorder %v471, 4
    %v473 = vsub.f32 %v456, %v467
    %v474 = vsub.f32 %v457, %v469
    %v475 = vsel %vm472, %v473, 0.0
    %v476 = vsel %vm472, %v474, 0.0
    %477 = vadd.xlane.f32.xlu0 %v475
    %v478 = vpop.xlane.xlu0 %477
    %479 = vadd.xlane.f32.xlu0 %v476
    %v480 = vpop.xlane.xlu0 %479
    %v481 = vsub.f32 %v478, 3.675754
    %v482 = vsub.f32 %v480, 3.675754
    %vm483 = vcmp.eq.s32.totalorder %v471, 4
    %v484 = vsel %vm483, %v481, %v436
    %v485 = vsel %vm483, %v482, %v437
    %486 = vst [vmem:[#allocation13] sm:$0xff] %v448
    %487 = vst [vmem:[#allocation13 + $0x8] sm:$0xff] %v450
    %488 = vst [vmem:[#allocation13 + $0x10] sm:$0xff] %v484
    %489 = vst [vmem:[#allocation13 + $0x18] sm:$0xff] %v449
    %490 = vst [vmem:[#allocation13 + $0x20] sm:$0xff] %v451
    %491 = vst [vmem:[#allocation13 + $0x28] sm:$0xff] %v485
    // Predicated region
    $region58: #{tpu_custom_call.1} parent=1 // pred_check
      _
    $region59: #{tpu_custom_call.1} parent=1 // pred_check_branch
      %493 = sbr.rel (0) target = $region61
    $region60: #{tpu_custom_call.1} parent=1 // pred_region
      %495 = vsyncadd [#allocation4], 0
      %s496 = sshll.u32 [#allocation13], 4
      %s497 = int_to_ptr.vmem [resolvable:$true] %s496
      %s498 = sshll.u32 %s8, 4
      %s499 = int_to_ptr.hbm [resolvable:$true] %s498
      %504 = dma.vmem_to_hbm [thread:$0]  %s497, 768, %s499, [#allocation4], 384, 384, 24
    $region61: #{tpu_custom_call.1} parent=1 // pred_fallthru
      _
    // Predicated region
    $region62: #{tpu_custom_call.1} parent=1 // pred_check
      _
    $region63: #{tpu_custom_call.1} parent=1 // pred_check_branch
      %506 = sbr.rel (0) target = $region65
    $region64: #{tpu_custom_call.1} parent=1 // pred_region
      %508 = dma.done [#allocation4], 768
    $region65: #{tpu_custom_call.1} parent=1 // pred_fallthru
      _
    %509 = vsyncpa [#allocation3], 1
    %510 = vsyncpa [#allocation6], 1
    %511 = vsyncpa [#allocation9], 1
    %512 = vsyncpa [#allocation12], 1
    %513 = vsyncpa [#allocation4], 1

// kernel: tpu_custom_call.1
$region0: #{tpu_custom_call.1}
  #allocation0 [shape = 'u32[]', space=smem, size = 0x4, offset = 0x4, fixed_abs, tag = 'smem constant byte address 0x4 - core index']
  #allocation1 [shape = 'u32[72,128]{1,0:T(1,128)}', space=vmem, size = 0x9000, scoped, tag = 'internal scratch']
  %s0 = inlined_call_operand.hbm [shape: bf16[16,128], index: 0, kind: input, shape index: {}]
  %s1 = inlined_call_operand.hbm [shape: bf16[128,128], index: 1, kind: input, shape index: {}]
  %s2 = inlined_call_operand.vmem [shape: f32[1,128], index: 2, kind: input, shape index: {}]
  %s3 = inlined_call_operand.hbm [shape: bf16[128,128], index: 3, kind: input, shape index: {}]
  %s4 = inlined_call_operand.hbm [shape: f32[1,128], index: 4, kind: input, shape index: {}]
  %s5 = inlined_call_operand.hbm [shape: bf16[128,256], index: 5, kind: input, shape index: {}]
  %s6 = inlined_call_operand.vmem [shape: f32[1,256], index: 6, kind: input, shape index: {}]
  %s7 = inlined_call_operand.hbm [shape: f32[16,128], index: 7, kind: input, shape index: {}]
  %s8 = inlined_call_operand.hbm [shape: f32[16,384], index: 8, kind: output, shape index: {}]
  %s9 = sld [smem:[#allocation0]]
  $region66: #{tpu_custom_call.1} parent=0
    _
  %s11 = ssub.s32 1, %s9
  %s12 = scalar_select 0, %s11, %s9
  $region1: #{tpu_custom_call.1} parent=0
    #allocation2 [shape = 'u8[4096]{0}', space=vmem, size = 0x1000, scoped, tag = 'input window, operand 0, single buffered']
    #allocation3 [shape = 's32[1]{0}', space=sflag, size = 0x4, scoped, tag = 'scoped memory for tpu_custom_call.1']
    #allocation4 [shape = 's32[1]{0}', space=sflag, size = 0x4, scoped, tag = 'scoped memory for tpu_custom_call.1']
    #allocation5 [shape = 'u8[32768]{0}', space=vmem, size = 0x8000, scoped, tag = 'input window, operand 1, single buffered']
    #allocation6 [shape = 's32[1]{0}', space=sflag, size = 0x4, scoped, tag = 'scoped memory for tpu_custom_call.1']
    #allocation7 [shape = 'u8[32768]{0}', space=vmem, size = 0x8000, scoped, tag = 'input window, operand 3, single buffered']
    #allocation8 [shape = 'u8[512]{0}', space=vmem, size = 0x400, scoped, tag = 'input window, operand 4, single buffered']
    #allocation9 [shape = 's32[1]{0}', space=sflag, size = 0x4, scoped, tag = 'scoped memory for tpu_custom_call.1']
    #allocation10 [shape = 'u8[65536]{0}', space=vmem, size = 0x10000, scoped, tag = 'input window, operand 5, single buffered']
    #allocation11 [shape = 'u8[8192]{0}', space=vmem, size = 0x2000, scoped, tag = 'input window, operand 7, single buffered']
    #allocation12 [shape = 's32[1]{0}', space=sflag, size = 0x4, scoped, tag = 'scoped memory for tpu_custom_call.1']
    #allocation13 [shape = 'u8[24576]{0}', space=vmem, size = 0x6000, scoped, tag = 'output window, operand 0, single buffered']
    %13 = vsyncpa [#allocation3], 0
    %14 = vsyncpa [#allocation6], 0
    %15 = vsyncpa [#allocation9], 0
    %16 = vsyncpa [#allocation12], 0
    %17 = vsyncpa [#allocation4], 0
    // Predicated region
    $region2: #{tpu_custom_call.1} parent=1 // pred_check
      _
    $region3: #{tpu_custom_call.1} parent=1 // pred_check_branch
      %19 = sbr.rel (0) target = $region5
    $region4: #{tpu_custom_call.1} parent=1 // pred_region
      %21 = vsyncadd [#allocation3], 0
      %s22 = sshll.u32 %s0, 4
      %s23 = int_to_ptr.hbm [resolvable:$true] %s22
      %s24 = sshll.u32 [#allocation2], 4
      %s25 = int_to_ptr.vmem [resolvable:$true] %s24
      %30 = dma.hbm_to_vmem [thread:$0]  %s23, 128, %s25, [#allocation3], 64, 64, 4
    $region5: #{tpu_custom_call.1} parent=1 // pred_fallthru
      _
    // Predicated region
    $region6: #{tpu_custom_call.1} parent=1 // pred_check
      _
    $region7: #{tpu_custom_call.1} parent=1 // pred_check_branch
      %32 = sbr.rel (0) target = $region9
    $region8: #{tpu_custom_call.1} parent=1 // pred_region
      %34 = vsyncadd [#allocation6], 0
      %s35 = sshll.u32 %s1, 4
      %s36 = int_to_ptr.hbm [resolvable:$true] %s35
      %s37 = sshll.u32 [#allocation5], 4
      %s38 = int_to_ptr.vmem [resolvable:$true] %s37
      %43 = dma.hbm_to_vmem [thread:$0]  %s36, 1024, %s38, [#allocation6], 64, 64, 4
    $region9: #{tpu_custom_call.1} parent=1 // pred_fallthru
      _
    // Predicated region
    $region10: #{tpu_custom_call.1} parent=1 // pred_check
      _
    $region11: #{tpu_custom_call.1} parent=1 // pred_check_branch
      %45 = sbr.rel (0) target = $region13
    $region12: #{tpu_custom_call.1} parent=1 // pred_region
      _
    $region13: #{tpu_custom_call.1} parent=1 // pred_fallthru
      _
    // Predicated region
    $region14: #{tpu_custom_call.1} parent=1 // pred_check
      _
    $region15: #{tpu_custom_call.1} parent=1 // pred_check_branch
      %47 = sbr.rel (0) target = $region17
    $region16: #{tpu_custom_call.1} parent=1 // pred_region
      %49 = vsyncadd [#allocation6], 0
      %s50 = sshll.u32 %s3, 4
      %s51 = int_to_ptr.hbm [resolvable:$true] %s50
      %s52 = sshll.u32 [#allocation7], 4
      %s53 = int_to_ptr.vmem [resolvable:$true] %s52
      %58 = dma.hbm_to_vmem [thread:$0]  %s51, 1024, %s53, [#allocation6], 64, 64, 4
    $region17: #{tpu_custom_call.1} parent=1 // pred_fallthru
      _
    // Predicated region
    $region18: #{tpu_custom_call.1} parent=1 // pred_check
      _
    $region19: #{tpu_custom_call.1} parent=1 // pred_check_branch
      %60 = sbr.rel (0) target = $region21
    $region20: #{tpu_custom_call.1} parent=1 // pred_region
      %62 = vsyncadd [#allocation9], 0
      %s64 = sshll.u32 %s4, 4
      %s65 = int_to_ptr.hbm [resolvable:$true] %s64
      %s66 = sshll.u32 [#allocation8], 4
      %s67 = int_to_ptr.vmem [resolvable:$true] %s66
      %69 = dma.hbm_to_vmem [thread:$0]  %s65, 16, %s67, [#allocation9]
    $region21: #{tpu_custom_call.1} parent=1 // pred_fallthru
      _
    // Predicated region
    $region22: #{tpu_custom_call.1} parent=1 // pred_check
      _
    $region23: #{tpu_custom_call.1} parent=1 // pred_check_branch
      %71 = sbr.rel (0) target = $region25
    $region24: #{tpu_custom_call.1} parent=1 // pred_region
      %73 = vsyncadd [#allocation9], 0
      %s74 = sshll.u32 %s5, 4
      %s75 = int_to_ptr.hbm [resolvable:$true] %s74
      %s76 = sshll.u32 [#allocation10], 4
      %s77 = int_to_ptr.vmem [resolvable:$true] %s76
      %82 = dma.hbm_to_vmem [thread:$0]  %s75, 2048, %s77, [#allocation9], 128, 128, 8
    $region25: #{tpu_custom_call.1} parent=1 // pred_fallthru
      _
    // Predicated region
    $region26: #{tpu_custom_call.1} parent=1 // pred_check
      _
    $region27: #{tpu_custom_call.1} parent=1 // pred_check_branch
      %84 = sbr.rel (0) target = $region29
    $region28: #{tpu_custom_call.1} parent=1 // pred_region
      _
    $region29: #{tpu_custom_call.1} parent=1 // pred_fallthru
      _
    // Predicated region
    $region30: #{tpu_custom_call.1} parent=1 // pred_check
      _
    $region31: #{tpu_custom_call.1} parent=1 // pred_check_branch
      %86 = sbr.rel (0) target = $region33
    $region32: #{tpu_custom_call.1} parent=1 // pred_region
      %88 = vsyncadd [#allocation12], 0
      %s89 = sshll.u32 %s7, 4
      %s90 = int_to_ptr.hbm [resolvable:$true] %s89
      %s91 = sshll.u32 [#allocation11], 4
      %s92 = int_to_ptr.vmem [resolvable:$true] %s91
      %97 = dma.hbm_to_vmem [thread:$0]  %s90, 256, %s92, [#allocation12], 128, 128, 8
    $region33: #{tpu_custom_call.1} parent=1 // pred_fallthru
      _
    // Predicated region
    $region34: #{tpu_custom_call.1} parent=1 // pred_check
      _
    $region35: #{tpu_custom_call.1} parent=1 // pred_check_branch
      %99 = sbr.rel (0) target = $region37
    $region36: #{tpu_custom_call.1} parent=1 // pred_region
      %101 = dma.done [#allocation3], 128
    $region37: #{tpu_custom_call.1} parent=1 // pred_fallthru
      _
    // Predicated region
    $region38: #{tpu_custom_call.1} parent=1 // pred_check
      _
    $region39: #{tpu_custom_call.1} parent=1 // pred_check_branch
      %103 = sbr.rel (0) target = $region41
    $region40: #{tpu_custom_call.1} parent=1 // pred_region
      %105 = dma.done [#allocation6], 1024
    $region41: #{tpu_custom_call.1} parent=1 // pred_fallthru
      _
    // Predicated region
    $region42: #{tpu_custom_call.1} parent=1 // pred_check
      _
    $region43: #{tpu_custom_call.1} parent=1 // pred_check_branch
      %107 = sbr.rel (0) target = $region45
    $region44: #{tpu_custom_call.1} parent=1 // pred_region
      %109 = dma.done [#allocation6], 1024
    $region45: #{tpu_custom_call.1} parent=1 // pred_fallthru
      _
    // Predicated region
    $region46: #{tpu_custom_call.1} parent=1 // pred_check
      _
    $region47: #{tpu_custom_call.1} parent=1 // pred_check_branch
      %111 = sbr.rel (0) target = $region49
    $region48: #{tpu_custom_call.1} parent=1 // pred_region
      %113 = dma.done [#allocation9], 16
    $region49: #{tpu_custom_call.1} parent=1 // pred_fallthru
      _
    // Predicated region
    $region50: #{tpu_custom_call.1} parent=1 // pred_check
      _
    $region51: #{tpu_custom_call.1} parent=1 // pred_check_branch
      %115 = sbr.rel (0) target = $region53
    $region52: #{tpu_custom_call.1} parent=1 // pred_region
      %117 = dma.done [#allocation9], 2048
    $region53: #{tpu_custom_call.1} parent=1 // pred_fallthru
      _
    // Predicated region
    $region54: #{tpu_custom_call.1} parent=1 // pred_check
      _
    $region55: #{tpu_custom_call.1} parent=1 // pred_check_branch
      %119 = sbr.rel (0) target = $region57
    $region56: #{tpu_custom_call.1} parent=1 // pred_region
      %121 = dma.done [#allocation12], 256
    $region57: #{tpu_custom_call.1} parent=1 // pred_fallthru
      _
    %v122 = vld [vmem:[#allocation2] sm:$0xf]
    %v123 = vld [vmem:[#allocation2 + $0x4] sm:$0xf]
    %v124 = vld [vmem:[#allocation5] sm:$0xf]
    %v125 = vld [vmem:[#allocation5 + $0x4] sm:$0xf]
    %v126 = vld [vmem:[#allocation5 + $0x8] sm:$0xf]
    %v127 = vld [vmem:[#allocation5 + $0xc] sm:$0xf]
    %v128 = vld [vmem:[#allocation5 + $0x10] sm:$0xf]
    %v129 = vld [vmem:[#allocation5 + $0x14] sm:$0xf]
    %v130 = vld [vmem:[#allocation5 + $0x18] sm:$0xf]
    %v131 = vld [vmem:[#allocation5 + $0x1c] sm:$0xf]
    %v132 = vld [vmem:[#allocation5 + $0x20] sm:$0xf]
    %v133 = vld [vmem:[#allocation5 + $0x24] sm:$0xf]
    %v134 = vld [vmem:[#allocation5 + $0x28] sm:$0xf]
    %v135 = vld [vmem:[#allocation5 + $0x2c] sm:$0xf]
    %v136 = vld [vmem:[#allocation5 + $0x30] sm:$0xf]
    %v137 = vld [vmem:[#allocation5 + $0x34] sm:$0xf]
    %v138 = vld [vmem:[#allocation5 + $0x38] sm:$0xf]
    %v139 = vld [vmem:[#allocation5 + $0x3c] sm:$0xf]
    %v140 = vld [vmem:[%s2] sm:$0x1]
    %v142 = vperm.slane %v140, 0
    %v146 = vunpack.c.l.b16 %v122
    %v147 = vunpack.c.l.b16 %v123
    %v148 = vpack.c.b16 %v147, %v146
    %v166 = vunpack.c.l.b16 %v124
    %v167 = vunpack.c.l.b16 %v125
    %v168 = vunpack.c.l.b16 %v126
    %v169 = vunpack.c.l.b16 %v127
    %v170 = vunpack.c.l.b16 %v128
    %v171 = vunpack.c.l.b16 %v129
    %v172 = vunpack.c.l.b16 %v130
    %v173 = vunpack.c.l.b16 %v131
    %v174 = vunpack.c.l.b16 %v132
    %v175 = vunpack.c.l.b16 %v133
    %v176 = vunpack.c.l.b16 %v134
    %v177 = vunpack.c.l.b16 %v135
    %v178 = vunpack.c.l.b16 %v136
    %v179 = vunpack.c.l.b16 %v137
    %v180 = vunpack.c.l.b16 %v138
    %v181 = vunpack.c.l.b16 %v139
    %v182 = vpack.c.b16 %v167, %v166
    %v183 = vpack.c.b16 %v169, %v168
    %v184 = vpack.c.b16 %v171, %v170
    %v185 = vpack.c.b16 %v173, %v172
    %v186 = vpack.c.b16 %v175, %v174
    %v187 = vpack.c.b16 %v177, %v176
    %v188 = vpack.c.b16 %v179, %v178
    %v189 = vpack.c.b16 %v181, %v180
    %198 = vmatpush.bf16.msra.mxu0 %v189
    %199 = vmatpush.bf16.msra.mxu0 %v188
    %200 = vmatpush.bf16.msra.mxu0 %v187
    %201 = vmatpush.bf16.msra.mxu0 %v186
    %202 = vmatpush.bf16.msra.mxu0 %v185
    %203 = vmatpush.bf16.msra.mxu0 %v184
    %204 = vmatpush.bf16.msra.mxu0 %v183
    %205 = vmatpush.bf16.msra.mxu0 %v182
    %206 = vmatmul.bf16.gmra.mxu0 %v148
    %v207 = vpop.f32.mrf.mxu0
    %v208 = vadd.f32 %v142, %v207
    %v209 = vpop.f32.mrf.mxu0
    %v210 = vadd.f32 %v142, %v209
    %211 = vdwg.mxu0
    %v212 = vmax.f32 %v208, 0.0
    %v213 = vmax.f32 %v210, 0.0
    %v214 = vpack.c.bf16 %v213, %v212
    %v215 = vld [vmem:[#allocation7] sm:$0xf]
    %v216 = vld [vmem:[#allocation7 + $0x4] sm:$0xf]
    %v217 = vld [vmem:[#allocation7 + $0x8] sm:$0xf]
    %v218 = vld [vmem:[#allocation7 + $0xc] sm:$0xf]
    %v219 = vld [vmem:[#allocation7 + $0x10] sm:$0xf]
    %v220 = vld [vmem:[#allocation7 + $0x14] sm:$0xf]
    %v221 = vld [vmem:[#allocation7 + $0x18] sm:$0xf]
    %v222 = vld [vmem:[#allocation7 + $0x1c] sm:$0xf]
    %v223 = vld [vmem:[#allocation7 + $0x20] sm:$0xf]
    %v224 = vld [vmem:[#allocation7 + $0x24] sm:$0xf]
    %v225 = vld [vmem:[#allocation7 + $0x28] sm:$0xf]
    %v226 = vld [vmem:[#allocation7 + $0x2c] sm:$0xf]
    %v227 = vld [vmem:[#allocation7 + $0x30] sm:$0xf]
    %v228 = vld [vmem:[#allocation7 + $0x34] sm:$0xf]
    %v229 = vld [vmem:[#allocation7 + $0x38] sm:$0xf]
    %v230 = vld [vmem:[#allocation7 + $0x3c] sm:$0xf]
    %v231 = vld [vmem:[#allocation8] sm:$0x1]
    %v233 = vperm.slane %v231, 0
    %v251 = vunpack.c.l.b16 %v215
    %v252 = vunpack.c.l.b16 %v216
    %v253 = vunpack.c.l.b16 %v217
    %v254 = vunpack.c.l.b16 %v218
    %v255 = vunpack.c.l.b16 %v219
    %v256 = vunpack.c.l.b16 %v220
    %v257 = vunpack.c.l.b16 %v221
    %v258 = vunpack.c.l.b16 %v222
    %v259 = vunpack.c.l.b16 %v223
    %v260 = vunpack.c.l.b16 %v224
    %v261 = vunpack.c.l.b16 %v225
    %v262 = vunpack.c.l.b16 %v226
    %v263 = vunpack.c.l.b16 %v227
    %v264 = vunpack.c.l.b16 %v228
    %v265 = vunpack.c.l.b16 %v229
    %v266 = vunpack.c.l.b16 %v230
    %v267 = vpack.c.b16 %v252, %v251
    %v268 = vpack.c.b16 %v254, %v253
    %v269 = vpack.c.b16 %v256, %v255
    %v270 = vpack.c.b16 %v258, %v257
    %v271 = vpack.c.b16 %v260, %v259
    %v272 = vpack.c.b16 %v262, %v261
    %v273 = vpack.c.b16 %v264, %v263
    %v274 = vpack.c.b16 %v266, %v265
    %283 = vmatpush.bf16.msra.mxu0 %v274
    %284 = vmatpush.bf16.msra.mxu0 %v273
    %285 = vmatpush.bf16.msra.mxu0 %v272
    %286 = vmatpush.bf16.msra.mxu0 %v271
    %287 = vmatpush.bf16.msra.mxu0 %v270
    %288 = vmatpush.bf16.msra.mxu0 %v269
    %289 = vmatpush.bf16.msra.mxu0 %v268
    %290 = vmatpush.bf16.msra.mxu0 %v267
    %291 = vmatmul.bf16.gmra.mxu0 %v214
    %v292 = vpop.f32.mrf.mxu0
    %v293 = vadd.f32 %v233, %v292
    %v294 = vpop.f32.mrf.mxu0
    %v295 = vadd.f32 %v233, %v294
    %296 = vdwg.mxu0
    %v297 = vmax.f32 %v293, 0.0
    %v298 = vmax.f32 %v295, 0.0
    %v299 = vpack.c.bf16 %v298, %v297
    %v300 = vld [vmem:[#allocation10] sm:$0xff]
    %v301 = vld [vmem:[#allocation10 + $0x8] sm:$0xff]
    %v302 = vld [vmem:[#allocation10 + $0x10] sm:$0xff]
    %v303 = vld [vmem:[#allocation10 + $0x18] sm:$0xff]
    %v304 = vld [vmem:[#allocation10 + $0x20] sm:$0xff]
    %v305 = vld [vmem:[#allocation10 + $0x28] sm:$0xff]
    %v306 = vld [vmem:[#allocation10 + $0x30] sm:$0xff]
    %v307 = vld [vmem:[#allocation10 + $0x38] sm:$0xff]
    %v308 = vld [vmem:[#allocation10 + $0x40] sm:$0xff]
    %v309 = vld [vmem:[#allocation10 + $0x48] sm:$0xff]
    %v310 = vld [vmem:[#allocation10 + $0x50] sm:$0xff]
    %v311 = vld [vmem:[#allocation10 + $0x58] sm:$0xff]
    %v312 = vld [vmem:[#allocation10 + $0x60] sm:$0xff]
    %v313 = vld [vmem:[#allocation10 + $0x68] sm:$0xff]
    %v314 = vld [vmem:[#allocation10 + $0x70] sm:$0xff]
    %v315 = vld [vmem:[#allocation10 + $0x78] sm:$0xff]
    %v316 = vld [vmem:[%s6] sm:$0x3]
    %v318 = vperm.slane %v316, 0
    %v319 = vperm.slane %v316, 1
    %v338 = vunpack.c.l.b16 %v300
    %v339 = vunpack.c.h.b16 %v300
    %v340 = vunpack.c.l.b16 %v301
    %v341 = vunpack.c.h.b16 %v301
    %v342 = vunpack.c.l.b16 %v302
    %v343 = vunpack.c.h.b16 %v302
    %v344 = vunpack.c.l.b16 %v303
    %v345 = vunpack.c.h.b16 %v303
    %v346 = vunpack.c.l.b16 %v304
    %v347 = vunpack.c.h.b16 %v304
    %v348 = vunpack.c.l.b16 %v305
    %v349 = vunpack.c.h.b16 %v305
    %v350 = vunpack.c.l.b16 %v306
    %v351 = vunpack.c.h.b16 %v306
    %v352 = vunpack.c.l.b16 %v307
    %v353 = vunpack.c.h.b16 %v307
    %v354 = vunpack.c.l.b16 %v308
    %v355 = vunpack.c.h.b16 %v308
    %v356 = vunpack.c.l.b16 %v309
    %v357 = vunpack.c.h.b16 %v309
    %v358 = vunpack.c.l.b16 %v310
    %v359 = vunpack.c.h.b16 %v310
    %v360 = vunpack.c.l.b16 %v311
    %v361 = vunpack.c.h.b16 %v311
    %v362 = vunpack.c.l.b16 %v312
    %v363 = vunpack.c.h.b16 %v312
    %v364 = vunpack.c.l.b16 %v313
    %v365 = vunpack.c.h.b16 %v313
    %v366 = vunpack.c.l.b16 %v314
    %v367 = vunpack.c.h.b16 %v314
    %v368 = vunpack.c.l.b16 %v315
    %v369 = vunpack.c.h.b16 %v315
    %v370 = vpack.c.b16 %v340, %v338
    %v371 = vpack.c.b16 %v341, %v339
    %v372 = vpack.c.b16 %v344, %v342
    %v373 = vpack.c.b16 %v345, %v343
    %v374 = vpack.c.b16 %v348, %v346
    %v375 = vpack.c.b16 %v349, %v347
    %v376 = vpack.c.b16 %v352, %v350
    %v377 = vpack.c.b16 %v353, %v351
    %v378 = vpack.c.b16 %v356, %v354
    %v379 = vpack.c.b16 %v357, %v355
    %v380 = vpack.c.b16 %v360, %v358
    %v381 = vpack.c.b16 %v361, %v359
    %v382 = vpack.c.b16 %v364, %v362
    %v383 = vpack.c.b16 %v365, %v363
    %v384 = vpack.c.b16 %v368, %v366
    %v385 = vpack.c.b16 %v369, %v367
    %402 = vmatpush.bf16.msra.mxu0 %v384
    %403 = vmatpush.bf16.msra.mxu0 %v382
    %404 = vmatpush.bf16.msra.mxu0 %v380
    %405 = vmatpush.bf16.msra.mxu0 %v378
    %406 = vmatpush.bf16.msra.mxu0 %v376
    %407 = vmatpush.bf16.msra.mxu0 %v374
    %408 = vmatpush.bf16.msra.mxu0 %v372
    %409 = vmatpush.bf16.msra.mxu0 %v370
    %410 = vmatmul.bf16.gmra.mxu0 %v299
    %v411 = vpop.f32.mrf.mxu0
    %v412 = vadd.f32 %v318, %v411
    %v413 = vpop.f32.mrf.mxu0
    %v414 = vadd.f32 %v318, %v413
    %415 = vdwg.mxu0
    %416 = vmatpush.bf16.msra.mxu0 %v385
    %417 = vmatpush.bf16.msra.mxu0 %v383
    %418 = vmatpush.bf16.msra.mxu0 %v381
    %419 = vmatpush.bf16.msra.mxu0 %v379
    %420 = vmatpush.bf16.msra.mxu0 %v377
    %421 = vmatpush.bf16.msra.mxu0 %v375
    %422 = vmatpush.bf16.msra.mxu0 %v373
    %423 = vmatpush.bf16.msra.mxu0 %v371
    %424 = vmatmul.bf16.gmra.mxu0 %v299
    %v425 = vpop.f32.mrf.mxu0
    %v426 = vadd.f32 %v319, %v425
    %v427 = vpop.f32.mrf.mxu0
    %v428 = vadd.f32 %v319, %v427
    %429 = vdwg.mxu0
    %v430 = vtanh.pop %v426
    %v431 = vtanh.pop %v428
    %v432 = vadd.f32 %v430, 1.0
    %v433 = vadd.f32 %v431, 1.0
    %v434 = vmul.f32 %v432, 6.0
    %v435 = vmul.f32 %v433, 6.0
    %v436 = vadd.f32 %v434, -10.0
    %v437 = vadd.f32 %v435, -10.0
    %v438 = vld [vmem:[#allocation11] sm:$0xff]
    %v439 = vld [vmem:[#allocation11 + $0x8] sm:$0xff]
    %v440 = vmul.f32 %v436, 1.442695
    %v441 = vpow.pop %v440
    %v442 = vmul.f32 %v437, 1.442695
    %v443 = vpow.pop %v442
    %v444 = vmul.f32 %v438, %v441
    %v445 = vmul.f32 %v439, %v443
    %v446 = vadd.f32 %v412, %v444
    %v447 = vadd.f32 %v414, %v445
    %v448 = vtanh.pop %v412
    %v449 = vtanh.pop %v414
    %v450 = vtanh.pop %v446
    %v451 = vtanh.pop %v447
    %v452 = vmul.f32 %v438, -0.5
    %v453 = vmul.f32 %v439, -0.5
    %v454 = vmul.f32 %v452, %v438
    %v455 = vmul.f32 %v453, %v439
    %v456 = vsub.f32 %v454, %v436
    %v457 = vsub.f32 %v455, %v437
    %v458 = vmul.f32 %v450, %v450
    %v459 = vmul.f32 %v451, %v451
    %v460 = vsub.f32 1.0, %v458
    %v461 = vsub.f32 1.0, %v459
    %v462 = vmax.f32 %v460, 0.0
    %v463 = vmax.f32 %v461, 0.0
    %v464 = vadd.f32 %v462, 1e-06
    %v465 = vadd.f32 %v463, 1e-06
    %v466 = vlog2.pop %v464
    %v467 = vmul.f32 %v466, 0.6931472
    %v468 = vlog2.pop %v465
    %v469 = vmul.f32 %v468, 0.6931472
    %v470 = vlaneseq
    %v471 = vand.u32 %v470, 127
    %vm472 = vcmp.lt.s32.totalorder %v471, 4
    %v473 = vsub.f32 %v456, %v467
    %v474 = vsub.f32 %v457, %v469
    %v475 = vsel %vm472, %v473, 0.0
    %v476 = vsel %vm472, %v474, 0.0
    %477 = vadd.xlane.f32.xlu0 %v475
    %v478 = vpop.xlane.xlu0 %477
    %479 = vadd.xlane.f32.xlu0 %v476
    %v480 = vpop.xlane.xlu0 %479
    %v481 = vsub.f32 %v478, 3.675754
    %v482 = vsub.f32 %v480, 3.675754
    %vm483 = vcmp.eq.s32.totalorder %v471, 4
    %v484 = vsel %vm483, %v481, %v436
    %v485 = vsel %vm483, %v482, %v437
    %486 = vst [vmem:[#allocation13] sm:$0xff] %v448
    %487 = vst [vmem:[#allocation13 + $0x8] sm:$0xff] %v450
    %488 = vst [vmem:[#allocation13 + $0x10] sm:$0xff] %v484
    %489 = vst [vmem:[#allocation13 + $0x18] sm:$0xff] %v449
    %490 = vst [vmem:[#allocation13 + $0x20] sm:$0xff] %v451
    %491 = vst [vmem:[#allocation13 + $0x28] sm:$0xff] %v485
    // Predicated region
    $region58: #{tpu_custom_call.1} parent=1 // pred_check
      _
    $region59: #{tpu_custom_call.1} parent=1 // pred_check_branch
      %493 = sbr.rel (0) target = $region61
    $region60: #{tpu_custom_call.1} parent=1 // pred_region
      %495 = vsyncadd [#allocation4], 0
      %s496 = sshll.u32 [#allocation13], 4
      %s497 = int_to_ptr.vmem [resolvable:$true] %s496
      %s498 = sshll.u32 %s8, 4
      %s499 = int_to_ptr.hbm [resolvable:$true] %s498
      %504 = dma.vmem_to_hbm [thread:$0]  %s497, 768, %s499, [#allocation4], 384, 384, 24
    $region61: #{tpu_custom_call.1} parent=1 // pred_fallthru
      _
    // Predicated region
    $region62: #{tpu_custom_call.1} parent=1 // pred_check
      _
    $region63: #{tpu_custom_call.1} parent=1 // pred_check_branch
      %506 = sbr.rel (0) target = $region65
    $region64: #{tpu_custom_call.1} parent=1 // pred_region
      %508 = dma.done [#allocation4], 768
    $region65: #{tpu_custom_call.1} parent=1 // pred_fallthru
      _
    %509 = vsyncpa [#allocation3], 1
    %510 = vsyncpa [#allocation6], 1
    %511 = vsyncpa [#allocation9], 1
    %512 = vsyncpa [#allocation12], 1
    %513 = vsyncpa [#allocation4], 1

</llo_original>
